<compile_context>
chip_gen: v7x
topology: tpu7x:2x2x1
jax: 0.10.0
libtpu: 0.0.40
codegen_flags: <defaults>
</compile_context>

<pallas_src>
import jax
import jax.numpy as jnp
from jax import lax
from jax.experimental import pallas as pl
from jax.experimental.pallas import tpu as pltpu

DILATIONS = (1, 2, 4)   # per the module; max dilation bounds the causal prefix


def pdc_kernel(x_ref, w1_ref, w2_ref, w4_ref, b1_ref, b2_ref, b4_ref,
               wt_ref, bt_ref, out_ref, lhs_ref):
    # x_ref  : (TB, L, C)  f32   activations for TB batch elements
    # wd_ref : (2C, C)     bf16  fused-tap weight [w1_d^T ; w0_d^T]
    # bd_ref : (1, C)      f32   branch bias
    # wt_ref : (3C, NP)    bf16  fused (wc^T @ wf^T), classes lane-padded
    # bt_ref : (1, NP)     f32   fused (bc @ wf^T + bf), lane-padded
    # out_ref: (TB, 1, NP) f32
    # lhs_ref: (TB*L, 2C)  bf16  scratch holding [x | x_shifted_d]
    TB, L, C = x_ref.shape
    M = TB * L

    # bf16 cast happens here in VMEM (no wrapper-side HBM pad/cast pre-pass).
    x32 = x_ref[...].reshape(M, C)                       # relayout-free (L % 8 == 0)
    lhs_ref[:, :C] = x32.astype(jnp.bfloat16)            # shared LHS half, written once

    # within-batch time index; rows with t < d form the causal zero-prefix per branch
    t = lax.broadcasted_iota(jnp.int32, (M, 1), 0) % L

    def branch(d, w_ref, b_ref):
        # causal dilated conv (k=2): out[b,t] = x[b,t] @ w1^T + x[b,t-d] @ w0^T
        # Shift the flattened rows down by d and zero the first d rows of every batch
        # element (causal prefix + cross-batch bleed) -> exact left zero-padding.
        xs = jnp.where(t < d, 0.0, jnp.roll(x32, d, axis=0))
        lhs_ref[:, C:] = xs.astype(jnp.bfloat16)          # rewrite only the shifted half
        o = jnp.dot(lhs_ref[...], w_ref[...],
                    preferred_element_type=jnp.float32)   # (M, C) f32, K = 2C = 256
        o = jnp.maximum(o + b_ref[...], 0.0)              # bias + ReLU (ReLU twice is idempotent)
        # AdaptiveAvgPool1d(1): per-batch time mean, reduced per branch so the
        # (M, 3C) f32 concat slab never materializes.
        return jnp.mean(o.reshape(TB, L, C), axis=1)      # (TB, C) f32

    m = jnp.concatenate(
        [branch(1, w1_ref, b1_ref),
         branch(2, w2_ref, b2_ref),
         branch(4, w4_ref, b4_ref)], axis=-1)             # (TB, 3C)

    # fused tail: (1x1 conv -> mean -> linear) == m @ (wc^T wf^T) + (bc wf^T + bf)
    logits = jnp.dot(m.astype(wt_ref.dtype), wt_ref[...],
                     preferred_element_type=jnp.float32) + bt_ref[...]   # (TB, NP)
    out_ref[...] = logits[:, None, :]


def _choose_tb(B, L):
    # Fill MXU rows (target M = TB*L ~ 256) but keep >= 2 grid steps whenever B >= 2
    # so dimension_semantics=("parallel",) can shard across both v7x TensorCores.
    tb = max(1, 256 // max(L, 1))
    if B >= 2:
        tb = min(tb, (B + 1) // 2)
    return max(1, min(tb, B))


def pdc_forward(x, params):
    """x: (B, L, C) float32  ->  (B, num_classes) float32  (eval mode: Dropout == id)."""
    B, L, C = x.shape
    ncls = params["wf"].shape[0]
    NP = ((ncls + 127) // 128) * 128          # lane-dense padded class dim

    assert params["w0_1"].shape == (C, C), "kernel_size==2 / C_in==C_out assumed"
    assert max(DILATIONS) == 4, "causal-shift construction assumes max dilation 4"

    TB = _choose_tb(B, L)
    Bpad = ((B + TB - 1) // TB) * TB
    xb = x if Bpad == B else jnp.pad(x, ((0, Bpad - B), (0, 0), (0, 0)))
    grid = (Bpad // TB,)

    def branch_w(name):
        # fused-tap weight [w1^T ; w0^T]  (2C, C): one K=2C matmul per branch
        return jnp.concatenate(
            [params[f"w1_{name}"].T, params[f"w0_{name}"].T], axis=0
        ).astype(jnp.bfloat16)

    def branch_b(name):
        return params[f"b{name}"][None, :].astype(jnp.float32)

    # algebraic tail fusion: the time-mean is linear, so
    #   logits = mean_t(relu_cat) @ (wc^T @ wf^T) + (bc @ wf^T + bf)
    wt = params["wc"].T @ params["wf"].T                      # (3C, ncls) f32
    bt = params["bc"] @ params["wf"].T + params["bf"]         # (ncls,)    f32
    wt = jnp.pad(wt, ((0, 0), (0, NP - ncls))).astype(jnp.bfloat16)
    bt = jnp.pad(bt, (0, NP - ncls))[None, :].astype(jnp.float32)

    const2 = lambda i: (0, 0)
    out = pl.pallas_call(
        pdc_kernel,
        out_shape=jax.ShapeDtypeStruct((Bpad, 1, NP), jnp.float32),
        grid=grid,
        in_specs=[
            pl.BlockSpec((TB, L, C), lambda i: (i, 0, 0)),   # per-block activations
            pl.BlockSpec((2 * C, C), const2),                # resident branch weights
            pl.BlockSpec((2 * C, C), const2),
            pl.BlockSpec((2 * C, C), const2),
            pl.BlockSpec((1, C), const2),                    # per-branch biases
            pl.BlockSpec((1, C), const2),
            pl.BlockSpec((1, C), const2),
            pl.BlockSpec((3 * C, NP), const2),               # fused tail weight / bias
            pl.BlockSpec((1, NP), const2),
        ],
        out_specs=pl.BlockSpec((TB, 1, NP), lambda i: (i, 0, 0)),
        scratch_shapes=[pltpu.VMEM((TB * L, 2 * C), jnp.bfloat16)],
        compiler_params=pltpu.CompilerParams(
            dimension_semantics=("parallel",)),
    )(xb, branch_w("1"), branch_w("2"), branch_w("4"),
      branch_b("1"), branch_b("2"), branch_b("4"), wt, bt)

    return out[:B, 0, :ncls]


def pdc_reference(x, params):
    """Pure-JAX f32 reference of the same (eval-mode) forward pass."""
    B, L, C = x.shape
    pad = max(DILATIONS)
    xp = jnp.pad(x, ((0, 0), (pad, 0), (0, 0)))

    def block(d, w0, w1, b):
        xs = xp[:, pad - d:pad - d + L, :]
        o = jnp.einsum("blc,oc->blo", x, w1) + jnp.einsum("blc,oc->blo", xs, w0) + b
        return jax.nn.relu(o)

    o1 = block(1, params["w0_1"], params["w1_1"], params["b1"])
    o2 = block(2, params["w0_2"], params["w1_2"], params["b2"])
    o4 = block(4, params["w0_4"], params["w1_4"], params["b4"])
    cat = jnp.concatenate([o1, o2, o4], axis=-1)                  # (B, L, 3C)
    y = jnp.einsum("blk,ok->blo", cat, params["wc"]) + params["bc"]
    g = jnp.mean(y, axis=1)                                       # avgpool over time
    return g @ params["wf"].T + params["bf"]


def init_params(key, C, num_classes):
    ks = jax.random.split(key, 12)
    p = {}
    # TemporalBlock conv weights: torch shape (C_out, C_in, 2); init N(0, 0.01).
    # weight_norm folded (g = ||v|| at init -> effective weight == v).
    for i, name in enumerate(("1", "2", "4")):
        w = 0.01 * jax.random.normal(ks[3 * i], (C, C, 2), jnp.float32)
        p[f"w0_{name}"] = w[:, :, 0]
        p[f"w1_{name}"] = w[:, :, 1]
        p[f"b{name}"] = 0.01 * jax.random.normal(ks[3 * i + 1], (C,), jnp.float32)
    # 1x1 conv: (C, 3C)
    p["wc"] = 0.01 * jax.random.normal(ks[9], (C, 3 * C), jnp.float32)
    p["bc"] = 0.01 * jax.random.normal(ks[10], (C,), jnp.float32)
    # classifier: (num_classes, C)
    kf1, kf2 = jax.random.split(ks[11])
    p["wf"] = 0.01 * jax.random.normal(kf1, (num_classes, C), jnp.float32)
    p["bf"] = 0.01 * jax.random.normal(kf2, (num_classes,), jnp.float32)
    return p


if __name__ == "__main__":
    B, L, C = 2, 16, 128          # small shapes: batch=2, seq=16, input_size=128
    num_classes = 31

    key = jax.random.PRNGKey(0)
    kx, kp = jax.random.split(key)
    x = jax.random.normal(kx, (B, L, C), jnp.float32)
    params = init_params(kp, C, num_classes)

    out = jax.block_until_ready(pdc_forward(x, params))
    ref = pdc_reference(x, params)

    assert out.shape == (B, num_classes)
    # bf16 matmul operands (f32 accumulation) -> relaxed tolerance vs f32 reference
    assert jnp.allclose(out, ref, atol=2e-3, rtol=2e-2), "mismatch vs JAX reference"

    print("KERNEL_OK")
</pallas_src>

<mosaic_0001>
module attributes {stable_mosaic.version = 11 : i64} {
  func.func @pdc_kernel(%arg0: i32, %arg1: memref<1x16x128xf32, #tpu.memory_space<vmem>>, %arg2: memref<256x128xbf16, #tpu.memory_space<vmem>>, %arg3: memref<256x128xbf16, #tpu.memory_space<vmem>>, %arg4: memref<256x128xbf16, #tpu.memory_space<vmem>>, %arg5: memref<1x128xf32, #tpu.memory_space<vmem>>, %arg6: memref<1x128xf32, #tpu.memory_space<vmem>>, %arg7: memref<1x128xf32, #tpu.memory_space<vmem>>, %arg8: memref<384x128xbf16, #tpu.memory_space<vmem>>, %arg9: memref<1x128xf32, #tpu.memory_space<vmem>>, %arg10: memref<1x1x128xf32, #tpu.memory_space<vmem>>, %arg11: memref<16x256xbf16, #tpu.memory_space<vmem>>) attributes {dimension_semantics = [#tpu.dimension_semantics<parallel>], iteration_bounds = array<i64: 2>, scalar_prefetch = 0 : i64, scratch_operands = 1 : i64, tpu.core_type = #tpu.core_type<tc>, window_params = [{transform_indices = @transform_0, window_bounds = array<i64: 1, 16, 128>}, {pipeline_mode = #tpu.pipeline_mode<synchronous>, transform_indices = @transform_1, window_bounds = array<i64: 256, 128>}, {pipeline_mode = #tpu.pipeline_mode<synchronous>, transform_indices = @transform_2, window_bounds = array<i64: 256, 128>}, {pipeline_mode = #tpu.pipeline_mode<synchronous>, transform_indices = @transform_3, window_bounds = array<i64: 256, 128>}, {pipeline_mode = #tpu.pipeline_mode<synchronous>, transform_indices = @transform_4, window_bounds = array<i64: 1, 128>}, {pipeline_mode = #tpu.pipeline_mode<synchronous>, transform_indices = @transform_5, window_bounds = array<i64: 1, 128>}, {pipeline_mode = #tpu.pipeline_mode<synchronous>, transform_indices = @transform_6, window_bounds = array<i64: 1, 128>}, {pipeline_mode = #tpu.pipeline_mode<synchronous>, transform_indices = @transform_7, window_bounds = array<i64: 384, 128>}, {pipeline_mode = #tpu.pipeline_mode<synchronous>, transform_indices = @transform_8, window_bounds = array<i64: 1, 128>}, {transform_indices = @transform_9, window_bounds = array<i64: 1, 1, 128>}]} {
    %c0 = arith.constant 0 : index
    %c0_0 = arith.constant 0 : index
    %c0_1 = arith.constant 0 : index
    %0 = vector.load %arg1[%c0, %c0_0, %c0_1] : memref<1x16x128xf32, #tpu.memory_space<vmem>>, vector<1x16x128xf32>
    %1 = vector.shape_cast %0 : vector<1x16x128xf32> to vector<16x128xf32>
    %2 = arith.truncf %1 : vector<16x128xf32> to vector<16x128xbf16>
    %c0_2 = arith.constant 0 : index
    %c0_3 = arith.constant 0 : index
    %3 = vector.load %arg11[%c0_2, %c0_3] : memref<16x256xbf16, #tpu.memory_space<vmem>>, vector<16x128xbf16>
    tpu.vector_store %arg11[%c0_2, %c0_3], %2 {strides = array<i32>} : memref<16x256xbf16, #tpu.memory_space<vmem>>, vector<16x128xbf16>,
    %4 = tpu.iota {dimensions = array<i32: 0>} : vector<16x1xi32>
    %c16_i32 = arith.constant 16 : i32
    %c0_i32 = arith.constant 0 : i32
    %5 = arith.cmpi eq, %c16_i32, %c0_i32 : i32
    %c1_i32 = arith.constant 1 : i32
    %6 = arith.select %5, %c1_i32, %c16_i32 : i32
    %7 = vector.broadcast %6 : i32 to vector<16x1xi32>
    %8 = arith.remsi %4, %7 : vector<16x1xi32>
    %c0_i32_4 = arith.constant 0 : i32
    %9 = vector.broadcast %c0_i32_4 : i32 to vector<16x1xi32>
    %10 = arith.cmpi ne, %8, %9 : vector<16x1xi32>
    %c0_i32_5 = arith.constant 0 : i32
    %11 = vector.broadcast %c0_i32_5 : i32 to vector<16x1xi32>
    %12 = arith.cmpi slt, %8, %11 : vector<16x1xi32>
    %c0_i32_6 = arith.constant 0 : i32
    %13 = arith.cmpi slt, %6, %c0_i32_6 : i32
    %14 = vector.broadcast %13 : i1 to vector<16x1xi1>
    %15 = vector.broadcast %14 : vector<16x1xi1> to vector<16x1xi1>
    %16 = arith.xori %12, %15 : vector<16x1xi1>
    %17 = arith.andi %16, %10 : vector<16x1xi1>
    %18 = vector.broadcast %6 : i32 to vector<16x1xi32>
    %19 = arith.addi %8, %18 : vector<16x1xi32>
    %20 = arith.select %17, %19, %8 : vector<16x1xi1>, vector<16x1xi32>
    %c1_i32_7 = arith.constant 1 : i32
    %21 = vector.broadcast %c1_i32_7 : i32 to vector<16x1xi32>
    %22 = arith.cmpi slt, %20, %21 : vector<16x1xi32>
    %23 = vector.extract_strided_slice %1 {offsets = [15, 0], sizes = [1, 128], strides = [1, 1]} : vector<16x128xf32> to vector<1x128xf32>
    %24 = vector.extract_strided_slice %1 {offsets = [0, 0], sizes = [15, 128], strides = [1, 1]} : vector<16x128xf32> to vector<15x128xf32>
    %25 = tpu.concatenate %23, %24 in 0 : vector<1x128xf32>, vector<15x128xf32> -> vector<16x128xf32>
    %cst = arith.constant 0.000000e+00 : f32
    %26 = vector.shape_cast %22 : vector<16x1xi1> to vector<16x1xi1>
    %27 = vector.broadcast %26 : vector<16x1xi1> to vector<16x128xi1>
    %28 = vector.broadcast %cst : f32 to vector<16x128xf32>
    %29 = arith.select %27, %28, %25 : vector<16x128xi1>, vector<16x128xf32>
    %30 = arith.truncf %29 : vector<16x128xf32> to vector<16x128xbf16>
    %c0_8 = arith.constant 0 : index
    %c128 = arith.constant 128 : index
    %31 = vector.load %arg11[%c0_8, %c128] : memref<16x256xbf16, #tpu.memory_space<vmem>>, vector<16x128xbf16>
    tpu.vector_store %arg11[%c0_8, %c128], %30 {strides = array<i32>} : memref<16x256xbf16, #tpu.memory_space<vmem>>, vector<16x128xbf16>,
    %c0_9 = arith.constant 0 : index
    %c0_10 = arith.constant 0 : index
    %32 = vector.load %arg11[%c0_9, %c0_10] : memref<16x256xbf16, #tpu.memory_space<vmem>>, vector<16x256xbf16>
    %c0_11 = arith.constant 0 : index
    %c0_12 = arith.constant 0 : index
    %33 = vector.load %arg2[%c0_11, %c0_12] : memref<256x128xbf16, #tpu.memory_space<vmem>>, vector<256x128xbf16>
    %cst_13 = arith.constant dense<0.000000e+00> : vector<16x128xf32>
    %34 = tpu.matmul %32, %33, %cst_13 {dimension_numbers = #tpu.dot_dimension_numbers<[1], [0], [0], [1], [0, 0, 1, 1], [], []>} : vector<16x256xbf16>, vector<256x128xbf16>, vector<16x128xf32> -> vector<16x128xf32>
    %c0_14 = arith.constant 0 : index
    %c0_15 = arith.constant 0 : index
    %35 = vector.load %arg5[%c0_14, %c0_15] : memref<1x128xf32, #tpu.memory_space<vmem>>, vector<1x128xf32>
    %36 = vector.broadcast %35 : vector<1x128xf32> to vector<16x128xf32>
    %37 = arith.addf %34, %36 : vector<16x128xf32>
    %cst_16 = arith.constant 0.000000e+00 : f32
    %38 = vector.broadcast %cst_16 : f32 to vector<16x128xf32>
    %39 = arith.maximumf %37, %38 : vector<16x128xf32>
    %40 = vector.shape_cast %39 : vector<16x128xf32> to vector<1x16x128xf32>
    %cst_17 = arith.constant dense<0.000000e+00> : vector<1x128xf32>
    %41 = vector.multi_reduction <add>, %40, %cst_17 [1] : vector<1x16x128xf32> to vector<1x128xf32>
    %cst_18 = arith.constant 1.600000e+01 : f32
    %42 = vector.broadcast %cst_18 : f32 to vector<1x128xf32>
    %43 = arith.divf %41, %42 : vector<1x128xf32>
    %c2_i32 = arith.constant 2 : i32
    %44 = vector.broadcast %c2_i32 : i32 to vector<16x1xi32>
    %45 = arith.cmpi slt, %20, %44 : vector<16x1xi32>
    %46 = vector.extract_strided_slice %1 {offsets = [14, 0], sizes = [2, 128], strides = [1, 1]} : vector<16x128xf32> to vector<2x128xf32>
    %47 = vector.extract_strided_slice %1 {offsets = [0, 0], sizes = [14, 128], strides = [1, 1]} : vector<16x128xf32> to vector<14x128xf32>
    %48 = tpu.concatenate %46, %47 in 0 : vector<2x128xf32>, vector<14x128xf32> -> vector<16x128xf32>
    %cst_19 = arith.constant 0.000000e+00 : f32
    %49 = vector.shape_cast %45 : vector<16x1xi1> to vector<16x1xi1>
    %50 = vector.broadcast %49 : vector<16x1xi1> to vector<16x128xi1>
    %51 = vector.broadcast %cst_19 : f32 to vector<16x128xf32>
    %52 = arith.select %50, %51, %48 : vector<16x128xi1>, vector<16x128xf32>
    %53 = arith.truncf %52 : vector<16x128xf32> to vector<16x128xbf16>
    %c0_20 = arith.constant 0 : index
    %c128_21 = arith.constant 128 : index
    %54 = vector.load %arg11[%c0_20, %c128_21] : memref<16x256xbf16, #tpu.memory_space<vmem>>, vector<16x128xbf16>
    tpu.vector_store %arg11[%c0_20, %c128_21], %53 {strides = array<i32>} : memref<16x256xbf16, #tpu.memory_space<vmem>>, vector<16x128xbf16>,
    %c0_22 = arith.constant 0 : index
    %c0_23 = arith.constant 0 : index
    %55 = vector.load %arg11[%c0_22, %c0_23] : memref<16x256xbf16, #tpu.memory_space<vmem>>, vector<16x256xbf16>
    %c0_24 = arith.constant 0 : index
    %c0_25 = arith.constant 0 : index
    %56 = vector.load %arg3[%c0_24, %c0_25] : memref<256x128xbf16, #tpu.memory_space<vmem>>, vector<256x128xbf16>
    %cst_26 = arith.constant dense<0.000000e+00> : vector<16x128xf32>
    %57 = tpu.matmul %55, %56, %cst_26 {dimension_numbers = #tpu.dot_dimension_numbers<[1], [0], [0], [1], [0, 0, 1, 1], [], []>} : vector<16x256xbf16>, vector<256x128xbf16>, vector<16x128xf32> -> vector<16x128xf32>
    %c0_27 = arith.constant 0 : index
    %c0_28 = arith.constant 0 : index
    %58 = vector.load %arg6[%c0_27, %c0_28] : memref<1x128xf32, #tpu.memory_space<vmem>>, vector<1x128xf32>
    %59 = vector.broadcast %58 : vector<1x128xf32> to vector<16x128xf32>
    %60 = arith.addf %57, %59 : vector<16x128xf32>
    %cst_29 = arith.constant 0.000000e+00 : f32
    %61 = vector.broadcast %cst_29 : f32 to vector<16x128xf32>
    %62 = arith.maximumf %60, %61 : vector<16x128xf32>
    %63 = vector.shape_cast %62 : vector<16x128xf32> to vector<1x16x128xf32>
    %cst_30 = arith.constant dense<0.000000e+00> : vector<1x128xf32>
    %64 = vector.multi_reduction <add>, %63, %cst_30 [1] : vector<1x16x128xf32> to vector<1x128xf32>
    %cst_31 = arith.constant 1.600000e+01 : f32
    %65 = vector.broadcast %cst_31 : f32 to vector<1x128xf32>
    %66 = arith.divf %64, %65 : vector<1x128xf32>
    %c4_i32 = arith.constant 4 : i32
    %67 = vector.broadcast %c4_i32 : i32 to vector<16x1xi32>
    %68 = arith.cmpi slt, %20, %67 : vector<16x1xi32>
    %69 = vector.extract_strided_slice %1 {offsets = [12, 0], sizes = [4, 128], strides = [1, 1]} : vector<16x128xf32> to vector<4x128xf32>
    %70 = vector.extract_strided_slice %1 {offsets = [0, 0], sizes = [12, 128], strides = [1, 1]} : vector<16x128xf32> to vector<12x128xf32>
    %71 = tpu.concatenate %69, %70 in 0 : vector<4x128xf32>, vector<12x128xf32> -> vector<16x128xf32>
    %cst_32 = arith.constant 0.000000e+00 : f32
    %72 = vector.shape_cast %68 : vector<16x1xi1> to vector<16x1xi1>
    %73 = vector.broadcast %72 : vector<16x1xi1> to vector<16x128xi1>
    %74 = vector.broadcast %cst_32 : f32 to vector<16x128xf32>
    %75 = arith.select %73, %74, %71 : vector<16x128xi1>, vector<16x128xf32>
    %76 = arith.truncf %75 : vector<16x128xf32> to vector<16x128xbf16>
    %c0_33 = arith.constant 0 : index
    %c128_34 = arith.constant 128 : index
    %77 = vector.load %arg11[%c0_33, %c128_34] : memref<16x256xbf16, #tpu.memory_space<vmem>>, vector<16x128xbf16>
    tpu.vector_store %arg11[%c0_33, %c128_34], %76 {strides = array<i32>} : memref<16x256xbf16, #tpu.memory_space<vmem>>, vector<16x128xbf16>,
    %c0_35 = arith.constant 0 : index
    %c0_36 = arith.constant 0 : index
    %78 = vector.load %arg11[%c0_35, %c0_36] : memref<16x256xbf16, #tpu.memory_space<vmem>>, vector<16x256xbf16>
    %c0_37 = arith.constant 0 : index
    %c0_38 = arith.constant 0 : index
    %79 = vector.load %arg4[%c0_37, %c0_38] : memref<256x128xbf16, #tpu.memory_space<vmem>>, vector<256x128xbf16>
    %cst_39 = arith.constant dense<0.000000e+00> : vector<16x128xf32>
    %80 = tpu.matmul %78, %79, %cst_39 {dimension_numbers = #tpu.dot_dimension_numbers<[1], [0], [0], [1], [0, 0, 1, 1], [], []>} : vector<16x256xbf16>, vector<256x128xbf16>, vector<16x128xf32> -> vector<16x128xf32>
    %c0_40 = arith.constant 0 : index
    %c0_41 = arith.constant 0 : index
    %81 = vector.load %arg7[%c0_40, %c0_41] : memref<1x128xf32, #tpu.memory_space<vmem>>, vector<1x128xf32>
    %82 = vector.broadcast %81 : vector<1x128xf32> to vector<16x128xf32>
    %83 = arith.addf %80, %82 : vector<16x128xf32>
    %cst_42 = arith.constant 0.000000e+00 : f32
    %84 = vector.broadcast %cst_42 : f32 to vector<16x128xf32>
    %85 = arith.maximumf %83, %84 : vector<16x128xf32>
    %86 = vector.shape_cast %85 : vector<16x128xf32> to vector<1x16x128xf32>
    %cst_43 = arith.constant dense<0.000000e+00> : vector<1x128xf32>
    %87 = vector.multi_reduction <add>, %86, %cst_43 [1] : vector<1x16x128xf32> to vector<1x128xf32>
    %cst_44 = arith.constant 1.600000e+01 : f32
    %88 = vector.broadcast %cst_44 : f32 to vector<1x128xf32>
    %89 = arith.divf %87, %88 : vector<1x128xf32>
    %90 = tpu.concatenate %43, %66, %89 in 1 : vector<1x128xf32>, vector<1x128xf32>, vector<1x128xf32> -> vector<1x384xf32>
    %91 = arith.truncf %90 : vector<1x384xf32> to vector<1x384xbf16>
    %c0_45 = arith.constant 0 : index
    %c0_46 = arith.constant 0 : index
    %92 = vector.load %arg8[%c0_45, %c0_46] : memref<384x128xbf16, #tpu.memory_space<vmem>>, vector<384x128xbf16>
    %cst_47 = arith.constant dense<0.000000e+00> : vector<1x128xf32>
    %93 = tpu.matmul %91, %92, %cst_47 {dimension_numbers = #tpu.dot_dimension_numbers<[1], [0], [0], [1], [0, 0, 1, 1], [], []>} : vector<1x384xbf16>, vector<384x128xbf16>, vector<1x128xf32> -> vector<1x128xf32>
    %c0_48 = arith.constant 0 : index
    %c0_49 = arith.constant 0 : index
    %94 = vector.load %arg9[%c0_48, %c0_49] : memref<1x128xf32, #tpu.memory_space<vmem>>, vector<1x128xf32>
    %95 = arith.addf %93, %94 : vector<1x128xf32>
    %96 = vector.shape_cast %95 : vector<1x128xf32> to vector<1x1x128xf32>
    %c0_50 = arith.constant 0 : index
    %c0_51 = arith.constant 0 : index
    %c0_52 = arith.constant 0 : index
    %97 = vector.load %arg10[%c0_50, %c0_51, %c0_52] : memref<1x1x128xf32, #tpu.memory_space<vmem>>, vector<1x1x128xf32>
    tpu.vector_store %arg10[%c0_50, %c0_51, %c0_52], %96 {strides = array<i32>} : memref<1x1x128xf32, #tpu.memory_space<vmem>>, vector<1x1x128xf32>,
    return
  }
  func.func @transform_0(%arg0: i32) -> (i32, i32, i32) {
    %c0_i32 = arith.constant 0 : i32
    %c0_i32_0 = arith.constant 0 : i32
    %c0_i32_1 = arith.constant 0 : i32
    return %arg0, %c0_i32, %c0_i32_0 : i32, i32, i32
  }
  func.func @transform_1(%arg0: i32) -> (i32, i32) {
    %c0_i32 = arith.constant 0 : i32
    %c0_i32_0 = arith.constant 0 : i32
    %c0_i32_1 = arith.constant 0 : i32
    return %c0_i32, %c0_i32_0 : i32, i32
  }
  func.func @transform_2(%arg0: i32) -> (i32, i32) {
    %c0_i32 = arith.constant 0 : i32
    %c0_i32_0 = arith.constant 0 : i32
    %c0_i32_1 = arith.constant 0 : i32
    return %c0_i32, %c0_i32_0 : i32, i32
  }
  func.func @transform_3(%arg0: i32) -> (i32, i32) {
    %c0_i32 = arith.constant 0 : i32
    %c0_i32_0 = arith.constant 0 : i32
    %c0_i32_1 = arith.constant 0 : i32
    return %c0_i32, %c0_i32_0 : i32, i32
  }
  func.func @transform_4(%arg0: i32) -> (i32, i32) {
    %c0_i32 = arith.constant 0 : i32
    %c0_i32_0 = arith.constant 0 : i32
    %c0_i32_1 = arith.constant 0 : i32
    return %c0_i32, %c0_i32_0 : i32, i32
  }
  func.func @transform_5(%arg0: i32) -> (i32, i32) {
    %c0_i32 = arith.constant 0 : i32
    %c0_i32_0 = arith.constant 0 : i32
    %c0_i32_1 = arith.constant 0 : i32
    return %c0_i32, %c0_i32_0 : i32, i32
  }
  func.func @transform_6(%arg0: i32) -> (i32, i32) {
    %c0_i32 = arith.constant 0 : i32
    %c0_i32_0 = arith.constant 0 : i32
    %c0_i32_1 = arith.constant 0 : i32
    return %c0_i32, %c0_i32_0 : i32, i32
  }
  func.func @transform_7(%arg0: i32) -> (i32, i32) {
    %c0_i32 = arith.constant 0 : i32
    %c0_i32_0 = arith.constant 0 : i32
    %c0_i32_1 = arith.constant 0 : i32
    return %c0_i32, %c0_i32_0 : i32, i32
  }
  func.func @transform_8(%arg0: i32) -> (i32, i32) {
    %c0_i32 = arith.constant 0 : i32
    %c0_i32_0 = arith.constant 0 : i32
    %c0_i32_1 = arith.constant 0 : i32
    return %c0_i32, %c0_i32_0 : i32, i32
  }
  func.func @transform_9(%arg0: i32) -> (i32, i32, i32) {
    %c0_i32 = arith.constant 0 : i32
    %c0_i32_0 = arith.constant 0 : i32
    %c0_i32_1 = arith.constant 0 : i32
    return %arg0, %c0_i32, %c0_i32_0 : i32, i32, i32
  }
}

</mosaic_0001>

<llo_original>
// kernel: tpu_custom_call.1
$region0: #{tpu_custom_call.1}
  #allocation0 [shape = 'u32[]', space=smem, size = 0x4, offset = 0x4, fixed_abs, tag = 'smem constant byte address 0x4 - core index']
  #allocation1 [shape = 'u32[144,128]{1,0:T(1,128)}', space=vmem, size = 0x12000, scoped, tag = 'internal scratch']
  #allocation2 [shape = 'bf16[16,256]{1,0:T(16,128)(2,1)}', space=vmem, size = 0x2000, scoped, tag = 'scratch operand']
  %s0 = inlined_call_operand.hbm [shape: f32[2,16,128], index: 0, kind: input, shape index: {}]
  %s1 = inlined_call_operand.hbm [shape: bf16[256,128], index: 1, kind: input, shape index: {}]
  %s2 = inlined_call_operand.hbm [shape: bf16[256,128], index: 2, kind: input, shape index: {}]
  %s3 = inlined_call_operand.hbm [shape: bf16[256,128], index: 3, kind: input, shape index: {}]
  %s4 = inlined_call_operand.vmem [shape: f32[1,128], index: 4, kind: input, shape index: {}]
  %s5 = inlined_call_operand.vmem [shape: f32[1,128], index: 5, kind: input, shape index: {}]
  %s6 = inlined_call_operand.vmem [shape: f32[1,128], index: 6, kind: input, shape index: {}]
  %s7 = inlined_call_operand.hbm [shape: bf16[384,128], index: 7, kind: input, shape index: {}]
  %s8 = inlined_call_operand.vmem [shape: f32[1,128], index: 8, kind: input, shape index: {}]
  %s9 = inlined_call_operand.hbm [shape: f32[2,1,128], index: 9, kind: output, shape index: {}]
  %s10 = sld [smem:[#allocation0]]
  $region89: #{tpu_custom_call.1} parent=0
    _
  %s12 = ssub.s32 1, %s10
  %s13 = scalar_select 0, %s12, %s10
  $region1: #{tpu_custom_call.1} parent=0
    #allocation3 [shape = 'u8[16384]{0}', space=vmem, size = 0x4000, scoped, tag = 'input window, operand 0']
    #allocation4 [shape = 's32[2]{0}', space=sflag, size = 0x8, scoped, tag = 'scoped memory for tpu_custom_call.1']
    #allocation5 [shape = 's32[2]{0}', space=sflag, size = 0x8, scoped, tag = 'scoped memory for tpu_custom_call.1']
    #allocation6 [shape = 'u8[65536]{0}', space=vmem, size = 0x10000, scoped, tag = 'input window, operand 1, single buffered']
    #allocation7 [shape = 's32[1]{0}', space=sflag, size = 0x4, scoped, tag = 'scoped memory for tpu_custom_call.1']
    #allocation8 [shape = 'u8[65536]{0}', space=vmem, size = 0x10000, scoped, tag = 'input window, operand 2, single buffered']
    #allocation9 [shape = 'u8[65536]{0}', space=vmem, size = 0x10000, scoped, tag = 'input window, operand 3, single buffered']
    #allocation10 [shape = 's32[1]{0}', space=sflag, size = 0x4, scoped, tag = 'scoped memory for tpu_custom_call.1']
    #allocation11 [shape = 'u8[98304]{0}', space=vmem, size = 0x18000, scoped, tag = 'input window, operand 7, single buffered']
    #allocation12 [shape = 'u8[1024]{0}', space=vmem, size = 0x400, scoped, tag = 'output window, operand 0']
    %14 = vsyncpa [#allocation4], 0
    %s15 = scalar_lea.sflag [#allocation4], 1
    %16 = vsyncpa %s15, 0
    %17 = vsyncpa [#allocation7], 0
    %18 = vsyncpa [#allocation10], 0
    %19 = vsyncpa [#allocation5], 0
    %s20 = scalar_lea.sflag [#allocation5], 1
    %21 = vsyncpa %s20, 0
    loop: start=0, step=1, limit=4
    $region2: #{tpu_custom_call.1} parent=1 // loop_pre_header
      _
    $region3: #{tpu_custom_call.1} parent=1 // loop_header
      %s23 = sphi 0, %s27
      %p24 = scmp.ge.s32.totalorder %s23, 4
      %s33 = sphi 0, %s35
      %s36 = sphi 0, %s33
      %s37 = sphi 0, %s36
      %s53 = sphi 0, %s37
      %s57 = sphi 0, %s57
      %s59 = sphi 0, %s57
      %s60 = sphi 0, %s59
      %s74 = sphi 0, %s60
      %s78 = sphi 0, %s78
      %s80 = sphi 0, %s78
      %s81 = sphi 0, %s80
      %s95 = sphi 0, %s81
      %s99 = sphi 0, %s99
      %s101 = sphi 0, %s99
      %s102 = sphi 0, %s101
      %s116 = sphi 0, %s102
      %s120 = sphi 0, %s120
      %s122 = sphi 0, %s120
      %s123 = sphi 0, %s122
      %s137 = sphi 0, %s123
      %s141 = sphi 0, %s141
      %s143 = sphi 0, %s141
      %s144 = sphi 0, %s143
      %s158 = sphi 0, %s144
      %s162 = sphi 0, %s162
      %s164 = sphi 0, %s162
      %s165 = sphi 0, %s164
      %s179 = sphi 0, %s165
      %s183 = sphi 0, %s183
      %s185 = sphi 0, %s183
      %s186 = sphi 0, %s185
      %s200 = sphi 0, %s186
      %s204 = sphi 0, %s204
      %s206 = sphi 0, %s204
      %s207 = sphi 0, %s206
      %s221 = sphi 0, %s207
      %s227 = sphi 0, %s229
      %s230 = sphi 0, %s227
      %s231 = sphi 0, %s230
      %s247 = sphi 0, %s231
    $region4: #{tpu_custom_call.1} parent=1 // loop_header_branch
      %26 = sbr.rel (%p24) target = $region8
    $region5: #{tpu_custom_call.1} parent=1 // loop_body
      %s28 = ssub.s32 %s23, 1
      %s29 = ssub.s32 %s23, 2
      %s30 = sadd.s32 %s23, 1
      %s31 = ssub.s32 %s23, %s30
      %p32 = scmp.eq.s32.totalorder %s31, 0
      %s34 = sadd.s32 %s33, 1
      %s35 = scalar_select %p32, %s33, %s34
      %p38 = pneg %p32
      %p39 = scmp.eq.s32.totalorder %s23, 1
      %p40 = por %p38, %p39
      %p41 = scmp.ne.s32.totalorder %s33, %s36
      %p42 = scmp.eq.s32.totalorder %s23, 0
      %p43 = por %p41, %p42
      %p44 = scmp.ne.s32.totalorder %s33, %s36
      %p45 = scmp.eq.s32.totalorder %s28, 1
      %p46 = por %p44, %p45
      %p47 = scmp.ne.s32.totalorder %s36, %s37
      %p48 = scmp.eq.s32.totalorder %s28, 0
      %p49 = por %p47, %p48
      %p50 = scmp.ne.s32.totalorder %s36, %s37
      %p51 = scmp.eq.s32.totalorder %s29, 1
      %p52 = por %p50, %p51
      %p54 = scmp.ne.s32.totalorder %s37, %s53
      %p55 = scmp.eq.s32.totalorder %s29, 0
      %p56 = por %p54, %p55
      %s58 = sadd.s32 %s57, 1
      %p61 = scmp.eq.s32.totalorder %s23, 1
      %p62 = scmp.ne.s32.totalorder %s57, %s59
      %p63 = scmp.eq.s32.totalorder %s23, 0
      %p64 = por %p62, %p63
      %p65 = scmp.ne.s32.totalorder %s57, %s59
      %p66 = scmp.eq.s32.totalorder %s28, 1
      %p67 = por %p65, %p66
      %p68 = scmp.ne.s32.totalorder %s59, %s60
      %p69 = scmp.eq.s32.totalorder %s28, 0
      %p70 = por %p68, %p69
      %p71 = scmp.ne.s32.totalorder %s59, %s60
      %p72 = scmp.eq.s32.totalorder %s29, 1
      %p73 = por %p71, %p72
      %p75 = scmp.ne.s32.totalorder %s60, %s74
      %p76 = scmp.eq.s32.totalorder %s29, 0
      %p77 = por %p75, %p76
      %s79 = sadd.s32 %s78, 1
      %p82 = scmp.eq.s32.totalorder %s23, 1
      %p83 = scmp.ne.s32.totalorder %s78, %s80
      %p84 = scmp.eq.s32.totalorder %s23, 0
      %p85 = por %p83, %p84
      %p86 = scmp.ne.s32.totalorder %s78, %s80
      %p87 = scmp.eq.s32.totalorder %s28, 1
      %p88 = por %p86, %p87
      %p89 = scmp.ne.s32.totalorder %s80, %s81
      %p90 = scmp.eq.s32.totalorder %s28, 0
      %p91 = por %p89, %p90
      %p92 = scmp.ne.s32.totalorder %s80, %s81
      %p93 = scmp.eq.s32.totalorder %s29, 1
      %p94 = por %p92, %p93
      %p96 = scmp.ne.s32.totalorder %s81, %s95
      %p97 = scmp.eq.s32.totalorder %s29, 0
      %p98 = por %p96, %p97
      %s100 = sadd.s32 %s99, 1
      %p103 = scmp.eq.s32.totalorder %s23, 1
      %p104 = scmp.ne.s32.totalorder %s99, %s101
      %p105 = scmp.eq.s32.totalorder %s23, 0
      %p106 = por %p104, %p105
      %p107 = scmp.ne.s32.totalorder %s99, %s101
      %p108 = scmp.eq.s32.totalorder %s28, 1
      %p109 = por %p107, %p108
      %p110 = scmp.ne.s32.totalorder %s101, %s102
      %p111 = scmp.eq.s32.totalorder %s28, 0
      %p112 = por %p110, %p111
      %p113 = scmp.ne.s32.totalorder %s101, %s102
      %p114 = scmp.eq.s32.totalorder %s29, 1
      %p115 = por %p113, %p114
      %p117 = scmp.ne.s32.totalorder %s102, %s116
      %p118 = scmp.eq.s32.totalorder %s29, 0
      %p119 = por %p117, %p118
      %s121 = sadd.s32 %s120, 1
      %p124 = scmp.eq.s32.totalorder %s23, 1
      %p125 = scmp.ne.s32.totalorder %s120, %s122
      %p126 = scmp.eq.s32.totalorder %s23, 0
      %p127 = por %p125, %p126
      %p128 = scmp.ne.s32.totalorder %s120, %s122
      %p129 = scmp.eq.s32.totalorder %s28, 1
      %p130 = por %p128, %p129
      %p131 = scmp.ne.s32.totalorder %s122, %s123
      %p132 = scmp.eq.s32.totalorder %s28, 0
      %p133 = por %p131, %p132
      %p134 = scmp.ne.s32.totalorder %s122, %s123
      %p135 = scmp.eq.s32.totalorder %s29, 1
      %p136 = por %p134, %p135
      %p138 = scmp.ne.s32.totalorder %s123, %s137
      %p139 = scmp.eq.s32.totalorder %s29, 0
      %p140 = por %p138, %p139
      %s142 = sadd.s32 %s141, 1
      %p145 = scmp.eq.s32.totalorder %s23, 1
      %p146 = scmp.ne.s32.totalorder %s141, %s143
      %p147 = scmp.eq.s32.totalorder %s23, 0
      %p148 = por %p146, %p147
      %p149 = scmp.ne.s32.totalorder %s141, %s143
      %p150 = scmp.eq.s32.totalorder %s28, 1
      %p151 = por %p149, %p150
      %p152 = scmp.ne.s32.totalorder %s143, %s144
      %p153 = scmp.eq.s32.totalorder %s28, 0
      %p154 = por %p152, %p153
      %p155 = scmp.ne.s32.totalorder %s143, %s144
      %p156 = scmp.eq.s32.totalorder %s29, 1
      %p157 = por %p155, %p156
      %p159 = scmp.ne.s32.totalorder %s144, %s158
      %p160 = scmp.eq.s32.totalorder %s29, 0
      %p161 = por %p159, %p160
      %s163 = sadd.s32 %s162, 1
      %p166 = scmp.eq.s32.totalorder %s23, 1
      %p167 = scmp.ne.s32.totalorder %s162, %s164
      %p168 = scmp.eq.s32.totalorder %s23, 0
      %p169 = por %p167, %p168
      %p170 = scmp.ne.s32.totalorder %s162, %s164
      %p171 = scmp.eq.s32.totalorder %s28, 1
      %p172 = por %p170, %p171
      %p173 = scmp.ne.s32.totalorder %s164, %s165
      %p174 = scmp.eq.s32.totalorder %s28, 0
      %p175 = por %p173, %p174
      %p176 = scmp.ne.s32.totalorder %s164, %s165
      %p177 = scmp.eq.s32.totalorder %s29, 1
      %p178 = por %p176, %p177
      %p180 = scmp.ne.s32.totalorder %s165, %s179
      %p181 = scmp.eq.s32.totalorder %s29, 0
      %p182 = por %p180, %p181
      %s184 = sadd.s32 %s183, 1
      %p187 = scmp.eq.s32.totalorder %s23, 1
      %p188 = scmp.ne.s32.totalorder %s183, %s185
      %p189 = scmp.eq.s32.totalorder %s23, 0
      %p190 = por %p188, %p189
      %p191 = scmp.ne.s32.totalorder %s183, %s185
      %p192 = scmp.eq.s32.totalorder %s28, 1
      %p193 = por %p191, %p192
      %p194 = scmp.ne.s32.totalorder %s185, %s186
      %p195 = scmp.eq.s32.totalorder %s28, 0
      %p196 = por %p194, %p195
      %p197 = scmp.ne.s32.totalorder %s185, %s186
      %p198 = scmp.eq.s32.totalorder %s29, 1
      %p199 = por %p197, %p198
      %p201 = scmp.ne.s32.totalorder %s186, %s200
      %p202 = scmp.eq.s32.totalorder %s29, 0
      %p203 = por %p201, %p202
      %s205 = sadd.s32 %s204, 1
      %p208 = scmp.eq.s32.totalorder %s23, 1
      %p209 = scmp.ne.s32.totalorder %s204, %s206
      %p210 = scmp.eq.s32.totalorder %s23, 0
      %p211 = por %p209, %p210
      %p212 = scmp.ne.s32.totalorder %s204, %s206
      %p213 = scmp.eq.s32.totalorder %s28, 1
      %p214 = por %p212, %p213
      %p215 = scmp.ne.s32.totalorder %s206, %s207
      %p216 = scmp.eq.s32.totalorder %s28, 0
      %p217 = por %p215, %p216
      %p218 = scmp.ne.s32.totalorder %s206, %s207
      %p219 = scmp.eq.s32.totalorder %s29, 1
      %p220 = por %p218, %p219
      %p222 = scmp.ne.s32.totalorder %s207, %s221
      %p223 = scmp.eq.s32.totalorder %s29, 0
      %p224 = por %p222, %p223
      %s225 = ssub.s32 %s23, %s30
      %p226 = scmp.eq.s32.totalorder %s225, 0
      %s228 = sadd.s32 %s227, 1
      %s229 = scalar_select %p226, %s227, %s228
      %p232 = pneg %p226
      %p233 = scmp.eq.s32.totalorder %s23, 1
      %p234 = por %p232, %p233
      %p235 = scmp.ne.s32.totalorder %s227, %s230
      %p236 = scmp.eq.s32.totalorder %s23, 0
      %p237 = por %p235, %p236
      %p238 = scmp.ne.s32.totalorder %s227, %s230
      %p239 = scmp.eq.s32.totalorder %s28, 1
      %p240 = por %p238, %p239
      %p241 = scmp.ne.s32.totalorder %s230, %s231
      %p242 = scmp.eq.s32.totalorder %s28, 0
      %p243 = por %p241, %p242
      %p244 = scmp.ne.s32.totalorder %s230, %s231
      %p245 = scmp.eq.s32.totalorder %s29, 1
      %p246 = por %p244, %p245
      %p248 = scmp.ne.s32.totalorder %s231, %s247
      %p249 = scmp.eq.s32.totalorder %s29, 0
      %p250 = por %p248, %p249
      %p251 = scmp.le.s32.totalorder 1, %s23
      %p252 = scmp.lt.s32.totalorder %s23, 3
      %p253 = pnand %p251, %p252
      %p254 = pneg %p253
      // Predicated region
      $region9: #{tpu_custom_call.1} parent=5 // pred_check
        _
      $region10: #{tpu_custom_call.1} parent=5 // pred_check_branch
        %256 = sbr.rel (%p253) target = $region12
      $region11: #{tpu_custom_call.1} parent=5 // pred_region
        %s257 = ssub.s32 %s23, 1
        // Predicated region
        $region13: #{tpu_custom_call.1} parent=11 // pred_check
          %p258 = pneg %p70
        $region14: #{tpu_custom_call.1} parent=11 // pred_check_branch
          %260 = sbr.rel (%p258) target = $region16
        $region15: #{tpu_custom_call.1} parent=11 // pred_region
          %s262 = ssub.s32 2048, 2048
          %263 = vsyncadd [#allocation7], %s262
          %s264 = sshll.u32 [#allocation6], 4
          %s265 = int_to_ptr.vmem [resolvable:$true] %s264
          %270 = dma.hbm_to_vmem [thread:$0]  %s1, 2048, %s265, [#allocation7], 64, 64, 4
        $region16: #{tpu_custom_call.1} parent=11 // pred_fallthru
          _
        // Predicated region
        $region17: #{tpu_custom_call.1} parent=11 // pred_check
          %p271 = pneg %p91
        $region18: #{tpu_custom_call.1} parent=11 // pred_check_branch
          %273 = sbr.rel (%p271) target = $region20
        $region19: #{tpu_custom_call.1} parent=11 // pred_region
          %s275 = ssub.s32 2048, 2048
          %276 = vsyncadd [#allocation7], %s275
          %s277 = sshll.u32 [#allocation8], 4
          %s278 = int_to_ptr.vmem [resolvable:$true] %s277
          %283 = dma.hbm_to_vmem [thread:$0]  %s2, 2048, %s278, [#allocation7], 64, 64, 4
        $region20: #{tpu_custom_call.1} parent=11 // pred_fallthru
          _
        // Predicated region
        $region21: #{tpu_custom_call.1} parent=11 // pred_check
          %p284 = pneg %p112
        $region22: #{tpu_custom_call.1} parent=11 // pred_check_branch
          %286 = sbr.rel (%p284) target = $region24
        $region23: #{tpu_custom_call.1} parent=11 // pred_region
          %s288 = ssub.s32 2048, 2048
          %289 = vsyncadd [#allocation10], %s288
          %s290 = sshll.u32 [#allocation9], 4
          %s291 = int_to_ptr.vmem [resolvable:$true] %s290
          %296 = dma.hbm_to_vmem [thread:$0]  %s3, 2048, %s291, [#allocation10], 64, 64, 4
        $region24: #{tpu_custom_call.1} parent=11 // pred_fallthru
          _
        // Predicated region
        $region25: #{tpu_custom_call.1} parent=11 // pred_check
          %p297 = pneg %p133
        $region26: #{tpu_custom_call.1} parent=11 // pred_check_branch
          %299 = sbr.rel (%p297) target = $region28
        $region27: #{tpu_custom_call.1} parent=11 // pred_region
          _
        $region28: #{tpu_custom_call.1} parent=11 // pred_fallthru
          _
        // Predicated region
        $region29: #{tpu_custom_call.1} parent=11 // pred_check
          %p300 = pneg %p154
        $region30: #{tpu_custom_call.1} parent=11 // pred_check_branch
          %302 = sbr.rel (%p300) target = $region32
        $region31: #{tpu_custom_call.1} parent=11 // pred_region
          _
        $region32: #{tpu_custom_call.1} parent=11 // pred_fallthru
          _
        // Predicated region
        $region33: #{tpu_custom_call.1} parent=11 // pred_check
          %p303 = pneg %p175
        $region34: #{tpu_custom_call.1} parent=11 // pred_check_branch
          %305 = sbr.rel (%p303) target = $region36
        $region35: #{tpu_custom_call.1} parent=11 // pred_region
          _
        $region36: #{tpu_custom_call.1} parent=11 // pred_fallthru
          _
        // Predicated region
        $region37: #{tpu_custom_call.1} parent=11 // pred_check
          %p306 = pneg %p196
        $region38: #{tpu_custom_call.1} parent=11 // pred_check_branch
          %308 = sbr.rel (%p306) target = $region40
        $region39: #{tpu_custom_call.1} parent=11 // pred_region
          %s310 = ssub.s32 3072, 3072
          %311 = vsyncadd [#allocation10], %s310
          %s312 = sshll.u32 [#allocation11], 4
          %s313 = int_to_ptr.vmem [resolvable:$true] %s312
          %318 = dma.hbm_to_vmem [thread:$0]  %s7, 3072, %s313, [#allocation10], 64, 64, 4
        $region40: #{tpu_custom_call.1} parent=11 // pred_fallthru
          _
        // Predicated region
        $region41: #{tpu_custom_call.1} parent=11 // pred_check
          %p319 = pneg %p217
        $region42: #{tpu_custom_call.1} parent=11 // pred_check_branch
          %321 = sbr.rel (%p319) target = $region44
        $region43: #{tpu_custom_call.1} parent=11 // pred_region
          _
        $region44: #{tpu_custom_call.1} parent=11 // pred_fallthru
          _
      $region12: #{tpu_custom_call.1} parent=5 // pred_fallthru
        _
      %p322 = scmp.lt.s32.totalorder %s23, 2
      // Predicated region
      $region45: #{tpu_custom_call.1} parent=5 // pred_check
        %p323 = pneg %p322
      $region46: #{tpu_custom_call.1} parent=5 // pred_check_branch
        %325 = sbr.rel (%p323) target = $region48
      $region47: #{tpu_custom_call.1} parent=5 // pred_region
        // Predicated region
        $region49: #{tpu_custom_call.1} parent=47 // pred_check
          %p326 = pneg %p43
        $region50: #{tpu_custom_call.1} parent=47 // pred_check_branch
          %328 = sbr.rel (%p326) target = $region52
        $region51: #{tpu_custom_call.1} parent=47 // pred_region
          %s329 = sand.u32 %s33, 1
          %s330 = scalar_lea.sflag [#allocation4], %s329
          %s331 = sand.u32 %s33, 1
          %s332 = smul.addr %s331, 16
          %s333 = scalar_lea.vmem [#allocation3], %s332
          %s335 = ssub.s32 256, 256
          %336 = vsyncadd %s330, %s335
          %s337 = smul.addr %s23, 2
          %s338 = smul.addr %s337, 128
          %s339 = scalar_lea.hbm %s0, %s338
          %s340 = sshll.u32 %s333, 4
          %s341 = int_to_ptr.vmem [resolvable:$true] %s340
          %346 = dma.hbm_to_vmem [thread:$0]  %s339, 256, %s341, %s330, 128, 128, 8
        $region52: #{tpu_custom_call.1} parent=47 // pred_fallthru
          _
      $region48: #{tpu_custom_call.1} parent=5 // pred_fallthru
        _
      %p347 = scmp.le.s32.totalorder 1, %s23
      %p348 = scmp.lt.s32.totalorder %s23, 3
      %p349 = pnand %p347, %p348
      %p350 = pneg %p349
      // Predicated region
      $region53: #{tpu_custom_call.1} parent=5 // pred_check
        _
      $region54: #{tpu_custom_call.1} parent=5 // pred_check_branch
        %352 = sbr.rel (%p349) target = $region56
      $region55: #{tpu_custom_call.1} parent=5 // pred_region
        %s353 = ssub.s32 %s23, 1
        %s354 = sand.u32 %s36, 1
        %s355 = scalar_lea.sflag [#allocation4], %s354
        %s356 = sand.u32 %s36, 1
        %s357 = smul.addr %s356, 16
        %s358 = scalar_lea.vmem [#allocation3], %s357
        // Predicated region
        $region57: #{tpu_custom_call.1} parent=55 // pred_check
          %p359 = pneg %p49
        $region58: #{tpu_custom_call.1} parent=55 // pred_check_branch
          %361 = sbr.rel (%p359) target = $region60
        $region59: #{tpu_custom_call.1} parent=55 // pred_region
          %362 = dma.done %s355, 256
        $region60: #{tpu_custom_call.1} parent=55 // pred_fallthru
          _
        // Predicated region
        $region61: #{tpu_custom_call.1} parent=55 // pred_check
          %p363 = pneg %p70
        $region62: #{tpu_custom_call.1} parent=55 // pred_check_branch
          %365 = sbr.rel (%p363) target = $region64
        $region63: #{tpu_custom_call.1} parent=55 // pred_region
          %366 = dma.done [#allocation7], 2048
        $region64: #{tpu_custom_call.1} parent=55 // pred_fallthru
          _
        // Predicated region
        $region65: #{tpu_custom_call.1} parent=55 // pred_check
          %p367 = pneg %p91
        $region66: #{tpu_custom_call.1} parent=55 // pred_check_branch
          %369 = sbr.rel (%p367) target = $region68
        $region67: #{tpu_custom_call.1} parent=55 // pred_region
          %370 = dma.done [#allocation7], 2048
        $region68: #{tpu_custom_call.1} parent=55 // pred_fallthru
          _
        // Predicated region
        $region69: #{tpu_custom_call.1} parent=55 // pred_check
          %p371 = pneg %p112
        $region70: #{tpu_custom_call.1} parent=55 // pred_check_branch
          %373 = sbr.rel (%p371) target = $region72
        $region71: #{tpu_custom_call.1} parent=55 // pred_region
          %374 = dma.done [#allocation10], 2048
        $region72: #{tpu_custom_call.1} parent=55 // pred_fallthru
          _
        // Predicated region
        $region73: #{tpu_custom_call.1} parent=55 // pred_check
          %p375 = pneg %p196
        $region74: #{tpu_custom_call.1} parent=55 // pred_check_branch
          %377 = sbr.rel (%p375) target = $region76
        $region75: #{tpu_custom_call.1} parent=55 // pred_region
          %378 = dma.done [#allocation10], 3072
        $region76: #{tpu_custom_call.1} parent=55 // pred_fallthru
          _
        %s379 = sand.u32 %s36, 1
        %s380 = scalar_lea.sflag [#allocation4], %s379
        %s381 = sand.u32 %s36, 1
        %s382 = smul.addr %s381, 16
        %s383 = scalar_lea.vmem [#allocation3], %s382
        %p384 = pneg %p49
        %p385 = pneg %p46
        %p386 = pneg %p70
        %p387 = pneg %p67
        %p388 = pneg %p91
        %p389 = pneg %p88
        %p390 = pneg %p112
        %p391 = pneg %p109
        %p392 = pneg %p133
        %p393 = pneg %p130
        %p394 = pneg %p154
        %p395 = pneg %p151
        %p396 = pneg %p175
        %p397 = pneg %p172
        %p398 = pneg %p196
        %p399 = pneg %p193
        %p400 = pneg %p217
        %p401 = pneg %p214
        %p402 = pneg %p243
        %p403 = pneg %p240
        %s404 = sand.u32 %s230, 1
        %s405 = scalar_lea.sflag [#allocation5], %s404
        %s406 = sand.u32 %s230, 1
        %s407 = scalar_lea.vmem [#allocation12], %s406
        %v409 = vld [vmem:[%s358] sm:$0xff]
        %v410 = vld [vmem:[%s358 + $0x8] sm:$0xff]
        %v411 = vpack.c.bf16 %v410, %v409
        %412 = vst [vmem:[#allocation2] sm:$0xff] %v411
        %v413 = vlaneseq
        %v414 = vshrl.u32 %v413, 7
        %v415 = vadd.s32 %v414, 8
        %vm416 = vcmp.lt.s32.totalorder %v414, 0
        %v417 = vsub.s32 0, %v414
        %v418 = vsel %vm416, %v417, %v414
        %v419 = vshrl.u32 %v418, 4
        %v420 = vand.u32 %v418, 15
        %v421 = vsub.s32 0, %v420
        %v422 = vsel %vm416, %v421, %v420
        %vm423 = vcmp.lt.s32.totalorder %v415, 0
        %v424 = vsub.s32 0, %v415
        %v425 = vsel %vm423, %v424, %v415
        %v426 = vshrl.u32 %v425, 4
        %v427 = vand.u32 %v425, 15
        %v428 = vsub.s32 0, %v427
        %v429 = vsel %vm423, %v428, %v427
        %vm430 = vcmp.ne.s32.totalorder %v422, 0
        %vm431 = vcmp.ne.s32.totalorder %v429, 0
        %vm432 = vcmp.lt.s32.totalorder %v422, 0
        %vm433 = vcmp.lt.s32.totalorder %v429, 0
        %vm434 = vmand %vm432, %vm430
        %vm435 = vmand %vm433, %vm431
        %v436 = vadd.s32 %v422, 16
        %v437 = vadd.s32 %v429, 16
        %v438 = vsel %vm434, %v436, %v422
        %v439 = vsel %vm435, %v437, %v429
        %vm440 = vcmp.lt.s32.totalorder %v438, 1
        %vm441 = vcmp.lt.s32.totalorder %v439, 1
        %v443 = vrot.slane %v410, 7
        %vm446 = vcmask 1040384
        %v447 = vrot.slane %v409, 7
        %v448 = vsel %vm446, %v447, %v443
        %v451 = vsel %vm446, %v443, %v447
        %v452 = vsel %vm440, 1, 0
        %v453 = vsel %vm441, 1, 0
        %vm454 = vcmp.eq.s32.totalorder %v452, 1
        %vm455 = vcmp.eq.s32.totalorder %v453, 1
        %v456 = vsel %vm454, 0.0, %v451
        %v457 = vsel %vm455, 0.0, %v448
        %v458 = vpack.c.bf16 %v457, %v456
        %459 = vst [vmem:[#allocation2 + $0x8] sm:$0xff] %v458
        %v460 = vld [vmem:[#allocation2] sm:$0xff]
        %v461 = vld [vmem:[#allocation2 + $0x8] sm:$0xff]
        %v462 = vld [vmem:[#allocation6] sm:$0xf]
        %v463 = vld [vmem:[#allocation6 + $0x4] sm:$0xf]
        %v464 = vld [vmem:[#allocation6 + $0x8] sm:$0xf]
        %v465 = vld [vmem:[#allocation6 + $0xc] sm:$0xf]
        %v466 = vld [vmem:[#allocation6 + $0x10] sm:$0xf]
        %v467 = vld [vmem:[#allocation6 + $0x14] sm:$0xf]
        %v468 = vld [vmem:[#allocation6 + $0x18] sm:$0xf]
        %v469 = vld [vmem:[#allocation6 + $0x1c] sm:$0xf]
        %v470 = vld [vmem:[#allocation6 + $0x20] sm:$0xf]
        %v471 = vld [vmem:[#allocation6 + $0x24] sm:$0xf]
        %v472 = vld [vmem:[#allocation6 + $0x28] sm:$0xf]
        %v473 = vld [vmem:[#allocation6 + $0x2c] sm:$0xf]
        %v474 = vld [vmem:[#allocation6 + $0x30] sm:$0xf]
        %v475 = vld [vmem:[#allocation6 + $0x34] sm:$0xf]
        %v476 = vld [vmem:[#allocation6 + $0x38] sm:$0xf]
        %v477 = vld [vmem:[#allocation6 + $0x3c] sm:$0xf]
        %v478 = vld [vmem:[#allocation6 + $0x40] sm:$0xf]
        %v479 = vld [vmem:[#allocation6 + $0x44] sm:$0xf]
        %v480 = vld [vmem:[#allocation6 + $0x48] sm:$0xf]
        %v481 = vld [vmem:[#allocation6 + $0x4c] sm:$0xf]
        %v482 = vld [vmem:[#allocation6 + $0x50] sm:$0xf]
        %v483 = vld [vmem:[#allocation6 + $0x54] sm:$0xf]
        %v484 = vld [vmem:[#allocation6 + $0x58] sm:$0xf]
        %v485 = vld [vmem:[#allocation6 + $0x5c] sm:$0xf]
        %v486 = vld [vmem:[#allocation6 + $0x60] sm:$0xf]
        %v487 = vld [vmem:[#allocation6 + $0x64] sm:$0xf]
        %v488 = vld [vmem:[#allocation6 + $0x68] sm:$0xf]
        %v489 = vld [vmem:[#allocation6 + $0x6c] sm:$0xf]
        %v490 = vld [vmem:[#allocation6 + $0x70] sm:$0xf]
        %v491 = vld [vmem:[#allocation6 + $0x74] sm:$0xf]
        %v492 = vld [vmem:[#allocation6 + $0x78] sm:$0xf]
        %v493 = vld [vmem:[#allocation6 + $0x7c] sm:$0xf]
        %v494 = vld [vmem:[%s4] sm:$0x1]
        %v496 = vlaneseq
        %v497 = vshrl.u32 %v496, 7
        %v498 = vsub.s32 0, %v497
        %v499 = vrot.slane %v494, %v498
        %v533 = vunpack.c.l.b16 %v462
        %v534 = vunpack.c.l.b16 %v463
        %v535 = vunpack.c.l.b16 %v464
        %v536 = vunpack.c.l.b16 %v465
        %v537 = vunpack.c.l.b16 %v466
        %v538 = vunpack.c.l.b16 %v467
        %v539 = vunpack.c.l.b16 %v468
        %v540 = vunpack.c.l.b16 %v469
        %v541 = vunpack.c.l.b16 %v470
        %v542 = vunpack.c.l.b16 %v471
        %v543 = vunpack.c.l.b16 %v472
        %v544 = vunpack.c.l.b16 %v473
        %v545 = vunpack.c.l.b16 %v474
        %v546 = vunpack.c.l.b16 %v475
        %v547 = vunpack.c.l.b16 %v476
        %v548 = vunpack.c.l.b16 %v477
        %v549 = vunpack.c.l.b16 %v478
        %v550 = vunpack.c.l.b16 %v479
        %v551 = vunpack.c.l.b16 %v480
        %v552 = vunpack.c.l.b16 %v481
        %v553 = vunpack.c.l.b16 %v482
        %v554 = vunpack.c.l.b16 %v483
        %v555 = vunpack.c.l.b16 %v484
        %v556 = vunpack.c.l.b16 %v485
        %v557 = vunpack.c.l.b16 %v486
        %v558 = vunpack.c.l.b16 %v487
        %v559 = vunpack.c.l.b16 %v488
        %v560 = vunpack.c.l.b16 %v489
        %v561 = vunpack.c.l.b16 %v490
        %v562 = vunpack.c.l.b16 %v491
        %v563 = vunpack.c.l.b16 %v492
        %v564 = vunpack.c.l.b16 %v493
        %v565 = vpack.c.b16 %v534, %v533
        %v566 = vpack.c.b16 %v536, %v535
        %v567 = vpack.c.b16 %v538, %v537
        %v568 = vpack.c.b16 %v540, %v539
        %v569 = vpack.c.b16 %v542, %v541
        %v570 = vpack.c.b16 %v544, %v543
        %v571 = vpack.c.b16 %v546, %v545
        %v572 = vpack.c.b16 %v548, %v547
        %v573 = vpack.c.b16 %v550, %v549
        %v574 = vpack.c.b16 %v552, %v551
        %v575 = vpack.c.b16 %v554, %v553
        %v576 = vpack.c.b16 %v556, %v555
        %v577 = vpack.c.b16 %v558, %v557
        %v578 = vpack.c.b16 %v560, %v559
        %v579 = vpack.c.b16 %v562, %v561
        %v580 = vpack.c.b16 %v564, %v563
        %597 = vmatprep.subr.bf16.mxu0 0
        %598 = vmatpush1.bf16.msra.mxu0 %v565
        %599 = vmatprep.subr.bf16.mxu0 0
        %600 = vmatpush1.bf16.msra.mxu0 %v566
        %601 = vmatprep.subr.bf16.mxu0 0
        %602 = vmatpush1.bf16.msra.mxu0 %v567
        %603 = vmatprep.subr.bf16.mxu0 0
        %604 = vmatpush1.bf16.msra.mxu0 %v568
        %605 = vmatprep.subr.bf16.mxu0 0
        %606 = vmatpush1.bf16.msra.mxu0 %v569
        %607 = vmatprep.subr.bf16.mxu0 0
        %608 = vmatpush1.bf16.msra.mxu0 %v570
        %609 = vmatprep.subr.bf16.mxu0 0
        %610 = vmatpush1.bf16.msra.mxu0 %v571
        %611 = vmatprep.subr.bf16.mxu0 0
        %612 = vmatpush1.bf16.msra.mxu0 %v572
        %613 = vmatprep.subr.bf16.mxu0 0
        %614 = vmatpush1.bf16.msra.mxu0 %v573
        %615 = vmatprep.subr.bf16.mxu0 0
        %616 = vmatpush1.bf16.msra.mxu0 %v574
        %617 = vmatprep.subr.bf16.mxu0 0
        %618 = vmatpush1.bf16.msra.mxu0 %v575
        %619 = vmatprep.subr.bf16.mxu0 0
        %620 = vmatpush1.bf16.msra.mxu0 %v576
        %621 = vmatprep.subr.bf16.mxu0 0
        %622 = vmatpush1.bf16.msra.mxu0 %v577
        %623 = vmatprep.subr.bf16.mxu0 0
        %624 = vmatpush1.bf16.msra.mxu0 %v578
        %625 = vmatprep.subr.bf16.mxu0 0
        %626 = vmatpush1.bf16.msra.mxu0 %v579
        %627 = vmatprep.subr.bf16.mxu0 0
        %628 = vmatpush1.bf16.msra.mxu0 %v580
        %629 = vmatprep.mubr.bf16.mxu0 %v461
        %630 = vmatmul.mubr.bf16.gmra.mrb[0].mxu0 %v460
        %v631 = vpop.f32.mrb[0].mxu0
        %v632 = vadd.f32 %v499, %v631
        %v633 = vpop.f32.mrb[0].mxu0
        %v634 = vpop.f32.mrb[0].mxu0
        %v635 = vadd.f32 %v499, %v634
        %v636 = vpop.f32.mrb[0].mxu0
        %637 = vdwg.mxu0
        %v638 = vmax.f32 %v632, 0.0
        %v639 = vmax.f32 %v635, 0.0
        %v640 = vadd.f32 %v638, %v639
        %v641 = vrot.slane %v640, 4
        %v642 = vadd.f32 %v640, %v641
        %v643 = vrot.slane %v642, 2
        %v644 = vadd.f32 %v642, %v643
        %v645 = vrot.slane %v644, 1
        %v646 = vadd.f32 %v644, %v645
        %v647 = vrcp.pop 16.0
        %v648 = vmul.f32 %v646, %v647
        %vm649 = vcmp.lt.s32.totalorder %v438, 2
        %vm650 = vcmp.lt.s32.totalorder %v439, 2
        %v651 = vrot.slane %v410, 6
        %vm653 = vcmask 1041408
        %v654 = vrot.slane %v409, 6
        %v655 = vsel %vm653, %v654, %v651
        %v658 = vsel %vm653, %v651, %v654
        %v659 = vsel %vm649, 1, 0
        %v660 = vsel %vm650, 1, 0
        %vm661 = vcmp.eq.s32.totalorder %v659, 1
        %vm662 = vcmp.eq.s32.totalorder %v660, 1
        %v663 = vsel %vm661, 0.0, %v658
        %v664 = vsel %vm662, 0.0, %v655
        %v665 = vpack.c.bf16 %v664, %v663
        %666 = vst [vmem:[#allocation2 + $0x8] sm:$0xff] %v665
        %v667 = vld [vmem:[#allocation2] sm:$0xff]
        %v668 = vld [vmem:[#allocation2 + $0x8] sm:$0xff]
        %v669 = vld [vmem:[#allocation8] sm:$0xf]
        %v670 = vld [vmem:[#allocation8 + $0x4] sm:$0xf]
        %v671 = vld [vmem:[#allocation8 + $0x8] sm:$0xf]
        %v672 = vld [vmem:[#allocation8 + $0xc] sm:$0xf]
        %v673 = vld [vmem:[#allocation8 + $0x10] sm:$0xf]
        %v674 = vld [vmem:[#allocation8 + $0x14] sm:$0xf]
        %v675 = vld [vmem:[#allocation8 + $0x18] sm:$0xf]
        %v676 = vld [vmem:[#allocation8 + $0x1c] sm:$0xf]
        %v677 = vld [vmem:[#allocation8 + $0x20] sm:$0xf]
        %v678 = vld [vmem:[#allocation8 + $0x24] sm:$0xf]
        %v679 = vld [vmem:[#allocation8 + $0x28] sm:$0xf]
        %v680 = vld [vmem:[#allocation8 + $0x2c] sm:$0xf]
        %v681 = vld [vmem:[#allocation8 + $0x30] sm:$0xf]
        %v682 = vld [vmem:[#allocation8 + $0x34] sm:$0xf]
        %v683 = vld [vmem:[#allocation8 + $0x38] sm:$0xf]
        %v684 = vld [vmem:[#allocation8 + $0x3c] sm:$0xf]
        %v685 = vld [vmem:[#allocation8 + $0x40] sm:$0xf]
        %v686 = vld [vmem:[#allocation8 + $0x44] sm:$0xf]
        %v687 = vld [vmem:[#allocation8 + $0x48] sm:$0xf]
        %v688 = vld [vmem:[#allocation8 + $0x4c] sm:$0xf]
        %v689 = vld [vmem:[#allocation8 + $0x50] sm:$0xf]
        %v690 = vld [vmem:[#allocation8 + $0x54] sm:$0xf]
        %v691 = vld [vmem:[#allocation8 + $0x58] sm:$0xf]
        %v692 = vld [vmem:[#allocation8 + $0x5c] sm:$0xf]
        %v693 = vld [vmem:[#allocation8 + $0x60] sm:$0xf]
        %v694 = vld [vmem:[#allocation8 + $0x64] sm:$0xf]
        %v695 = vld [vmem:[#allocation8 + $0x68] sm:$0xf]
        %v696 = vld [vmem:[#allocation8 + $0x6c] sm:$0xf]
        %v697 = vld [vmem:[#allocation8 + $0x70] sm:$0xf]
        %v698 = vld [vmem:[#allocation8 + $0x74] sm:$0xf]
        %v699 = vld [vmem:[#allocation8 + $0x78] sm:$0xf]
        %v700 = vld [vmem:[#allocation8 + $0x7c] sm:$0xf]
        %v701 = vld [vmem:[%s5] sm:$0x1]
        %v703 = vlaneseq
        %v704 = vshrl.u32 %v703, 7
        %v705 = vsub.s32 0, %v704
        %v706 = vrot.slane %v701, %v705
        %v740 = vunpack.c.l.b16 %v669
        %v741 = vunpack.c.l.b16 %v670
        %v742 = vunpack.c.l.b16 %v671
        %v743 = vunpack.c.l.b16 %v672
        %v744 = vunpack.c.l.b16 %v673
        %v745 = vunpack.c.l.b16 %v674
        %v746 = vunpack.c.l.b16 %v675
        %v747 = vunpack.c.l.b16 %v676
        %v748 = vunpack.c.l.b16 %v677
        %v749 = vunpack.c.l.b16 %v678
        %v750 = vunpack.c.l.b16 %v679
        %v751 = vunpack.c.l.b16 %v680
        %v752 = vunpack.c.l.b16 %v681
        %v753 = vunpack.c.l.b16 %v682
        %v754 = vunpack.c.l.b16 %v683
        %v755 = vunpack.c.l.b16 %v684
        %v756 = vunpack.c.l.b16 %v685
        %v757 = vunpack.c.l.b16 %v686
        %v758 = vunpack.c.l.b16 %v687
        %v759 = vunpack.c.l.b16 %v688
        %v760 = vunpack.c.l.b16 %v689
        %v761 = vunpack.c.l.b16 %v690
        %v762 = vunpack.c.l.b16 %v691
        %v763 = vunpack.c.l.b16 %v692
        %v764 = vunpack.c.l.b16 %v693
        %v765 = vunpack.c.l.b16 %v694
        %v766 = vunpack.c.l.b16 %v695
        %v767 = vunpack.c.l.b16 %v696
        %v768 = vunpack.c.l.b16 %v697
        %v769 = vunpack.c.l.b16 %v698
        %v770 = vunpack.c.l.b16 %v699
        %v771 = vunpack.c.l.b16 %v700
        %v772 = vpack.c.b16 %v741, %v740
        %v773 = vpack.c.b16 %v743, %v742
        %v774 = vpack.c.b16 %v745, %v744
        %v775 = vpack.c.b16 %v747, %v746
        %v776 = vpack.c.b16 %v749, %v748
        %v777 = vpack.c.b16 %v751, %v750
        %v778 = vpack.c.b16 %v753, %v752
        %v779 = vpack.c.b16 %v755, %v754
        %v780 = vpack.c.b16 %v757, %v756
        %v781 = vpack.c.b16 %v759, %v758
        %v782 = vpack.c.b16 %v761, %v760
        %v783 = vpack.c.b16 %v763, %v762
        %v784 = vpack.c.b16 %v765, %v764
        %v785 = vpack.c.b16 %v767, %v766
        %v786 = vpack.c.b16 %v769, %v768
        %v787 = vpack.c.b16 %v771, %v770
        %804 = vmatprep.subr.bf16.mxu0 0
        %805 = vmatpush1.bf16.msra.mxu0 %v772
        %806 = vmatprep.subr.bf16.mxu0 0
        %807 = vmatpush1.bf16.msra.mxu0 %v773
        %808 = vmatprep.subr.bf16.mxu0 0
        %809 = vmatpush1.bf16.msra.mxu0 %v774
        %810 = vmatprep.subr.bf16.mxu0 0
        %811 = vmatpush1.bf16.msra.mxu0 %v775
        %812 = vmatprep.subr.bf16.mxu0 0
        %813 = vmatpush1.bf16.msra.mxu0 %v776
        %814 = vmatprep.subr.bf16.mxu0 0
        %815 = vmatpush1.bf16.msra.mxu0 %v777
        %816 = vmatprep.subr.bf16.mxu0 0
        %817 = vmatpush1.bf16.msra.mxu0 %v778
        %818 = vmatprep.subr.bf16.mxu0 0
        %819 = vmatpush1.bf16.msra.mxu0 %v779
        %820 = vmatprep.subr.bf16.mxu0 0
        %821 = vmatpush1.bf16.msra.mxu0 %v780
        %822 = vmatprep.subr.bf16.mxu0 0
        %823 = vmatpush1.bf16.msra.mxu0 %v781
        %824 = vmatprep.subr.bf16.mxu0 0
        %825 = vmatpush1.bf16.msra.mxu0 %v782
        %826 = vmatprep.subr.bf16.mxu0 0
        %827 = vmatpush1.bf16.msra.mxu0 %v783
        %828 = vmatprep.subr.bf16.mxu0 0
        %829 = vmatpush1.bf16.msra.mxu0 %v784
        %830 = vmatprep.subr.bf16.mxu0 0
        %831 = vmatpush1.bf16.msra.mxu0 %v785
        %832 = vmatprep.subr.bf16.mxu0 0
        %833 = vmatpush1.bf16.msra.mxu0 %v786
        %834 = vmatprep.subr.bf16.mxu0 0
        %835 = vmatpush1.bf16.msra.mxu0 %v787
        %836 = vmatprep.mubr.bf16.mxu0 %v668
        %837 = vmatmul.mubr.bf16.gmra.mrb[0].mxu0 %v667
        %v838 = vpop.f32.mrb[0].mxu0
        %v839 = vadd.f32 %v706, %v838
        %v840 = vpop.f32.mrb[0].mxu0
        %v841 = vpop.f32.mrb[0].mxu0
        %v842 = vadd.f32 %v706, %v841
        %v843 = vpop.f32.mrb[0].mxu0
        %844 = vdwg.mxu0
        %v845 = vmax.f32 %v839, 0.0
        %v846 = vmax.f32 %v842, 0.0
        %v847 = vadd.f32 %v845, %v846
        %v848 = vrot.slane %v847, 4
        %v849 = vadd.f32 %v847, %v848
        %v850 = vrot.slane %v849, 2
        %v851 = vadd.f32 %v849, %v850
        %v852 = vrot.slane %v851, 1
        %v853 = vadd.f32 %v851, %v852
        %v854 = vmul.f32 %v853, %v647
        %vm855 = vcmp.lt.s32.totalorder %v438, 4
        %vm856 = vcmp.lt.s32.totalorder %v439, 4
        %v857 = vrot.slane %v410, 4
        %vm859 = vcmask 1043456
        %v860 = vrot.slane %v409, 4
        %v861 = vsel %vm859, %v860, %v857
        %v864 = vsel %vm859, %v857, %v860
        %v865 = vsel %vm855, 1, 0
        %v866 = vsel %vm856, 1, 0
        %vm867 = vcmp.eq.s32.totalorder %v865, 1
        %vm868 = vcmp.eq.s32.totalorder %v866, 1
        %v869 = vsel %vm867, 0.0, %v864
        %v870 = vsel %vm868, 0.0, %v861
        %v871 = vpack.c.bf16 %v870, %v869
        %872 = vst [vmem:[#allocation2 + $0x8] sm:$0xff] %v871
        %v873 = vld [vmem:[#allocation2] sm:$0xff]
        %v874 = vld [vmem:[#allocation2 + $0x8] sm:$0xff]
        %v875 = vld [vmem:[#allocation9] sm:$0xf]
        %v876 = vld [vmem:[#allocation9 + $0x4] sm:$0xf]
        %v877 = vld [vmem:[#allocation9 + $0x8] sm:$0xf]
        %v878 = vld [vmem:[#allocation9 + $0xc] sm:$0xf]
        %v879 = vld [vmem:[#allocation9 + $0x10] sm:$0xf]
        %v880 = vld [vmem:[#allocation9 + $0x14] sm:$0xf]
        %v881 = vld [vmem:[#allocation9 + $0x18] sm:$0xf]
        %v882 = vld [vmem:[#allocation9 + $0x1c] sm:$0xf]
        %v883 = vld [vmem:[#allocation9 + $0x20] sm:$0xf]
        %v884 = vld [vmem:[#allocation9 + $0x24] sm:$0xf]
        %v885 = vld [vmem:[#allocation9 + $0x28] sm:$0xf]
        %v886 = vld [vmem:[#allocation9 + $0x2c] sm:$0xf]
        %v887 = vld [vmem:[#allocation9 + $0x30] sm:$0xf]
        %v888 = vld [vmem:[#allocation9 + $0x34] sm:$0xf]
        %v889 = vld [vmem:[#allocation9 + $0x38] sm:$0xf]
        %v890 = vld [vmem:[#allocation9 + $0x3c] sm:$0xf]
        %v891 = vld [vmem:[#allocation9 + $0x40] sm:$0xf]
        %v892 = vld [vmem:[#allocation9 + $0x44] sm:$0xf]
        %v893 = vld [vmem:[#allocation9 + $0x48] sm:$0xf]
        %v894 = vld [vmem:[#allocation9 + $0x4c] sm:$0xf]
        %v895 = vld [vmem:[#allocation9 + $0x50] sm:$0xf]
        %v896 = vld [vmem:[#allocation9 + $0x54] sm:$0xf]
        %v897 = vld [vmem:[#allocation9 + $0x58] sm:$0xf]
        %v898 = vld [vmem:[#allocation9 + $0x5c] sm:$0xf]
        %v899 = vld [vmem:[#allocation9 + $0x60] sm:$0xf]
        %v900 = vld [vmem:[#allocation9 + $0x64] sm:$0xf]
        %v901 = vld [vmem:[#allocation9 + $0x68] sm:$0xf]
        %v902 = vld [vmem:[#allocation9 + $0x6c] sm:$0xf]
        %v903 = vld [vmem:[#allocation9 + $0x70] sm:$0xf]
        %v904 = vld [vmem:[#allocation9 + $0x74] sm:$0xf]
        %v905 = vld [vmem:[#allocation9 + $0x78] sm:$0xf]
        %v906 = vld [vmem:[#allocation9 + $0x7c] sm:$0xf]
        %v907 = vld [vmem:[%s6] sm:$0x1]
        %v909 = vlaneseq
        %v910 = vshrl.u32 %v909, 7
        %v911 = vsub.s32 0, %v910
        %v912 = vrot.slane %v907, %v911
        %v946 = vunpack.c.l.b16 %v875
        %v947 = vunpack.c.l.b16 %v876
        %v948 = vunpack.c.l.b16 %v877
        %v949 = vunpack.c.l.b16 %v878
        %v950 = vunpack.c.l.b16 %v879
        %v951 = vunpack.c.l.b16 %v880
        %v952 = vunpack.c.l.b16 %v881
        %v953 = vunpack.c.l.b16 %v882
        %v954 = vunpack.c.l.b16 %v883
        %v955 = vunpack.c.l.b16 %v884
        %v956 = vunpack.c.l.b16 %v885
        %v957 = vunpack.c.l.b16 %v886
        %v958 = vunpack.c.l.b16 %v887
        %v959 = vunpack.c.l.b16 %v888
        %v960 = vunpack.c.l.b16 %v889
        %v961 = vunpack.c.l.b16 %v890
        %v962 = vunpack.c.l.b16 %v891
        %v963 = vunpack.c.l.b16 %v892
        %v964 = vunpack.c.l.b16 %v893
        %v965 = vunpack.c.l.b16 %v894
        %v966 = vunpack.c.l.b16 %v895
        %v967 = vunpack.c.l.b16 %v896
        %v968 = vunpack.c.l.b16 %v897
        %v969 = vunpack.c.l.b16 %v898
        %v970 = vunpack.c.l.b16 %v899
        %v971 = vunpack.c.l.b16 %v900
        %v972 = vunpack.c.l.b16 %v901
        %v973 = vunpack.c.l.b16 %v902
        %v974 = vunpack.c.l.b16 %v903
        %v975 = vunpack.c.l.b16 %v904
        %v976 = vunpack.c.l.b16 %v905
        %v977 = vunpack.c.l.b16 %v906
        %v978 = vpack.c.b16 %v947, %v946
        %v979 = vpack.c.b16 %v949, %v948
        %v980 = vpack.c.b16 %v951, %v950
        %v981 = vpack.c.b16 %v953, %v952
        %v982 = vpack.c.b16 %v955, %v954
        %v983 = vpack.c.b16 %v957, %v956
        %v984 = vpack.c.b16 %v959, %v958
        %v985 = vpack.c.b16 %v961, %v960
        %v986 = vpack.c.b16 %v963, %v962
        %v987 = vpack.c.b16 %v965, %v964
        %v988 = vpack.c.b16 %v967, %v966
        %v989 = vpack.c.b16 %v969, %v968
        %v990 = vpack.c.b16 %v971, %v970
        %v991 = vpack.c.b16 %v973, %v972
        %v992 = vpack.c.b16 %v975, %v974
        %v993 = vpack.c.b16 %v977, %v976
        %1010 = vmatprep.subr.bf16.mxu0 0
        %1011 = vmatpush1.bf16.msra.mxu0 %v978
        %1012 = vmatprep.subr.bf16.mxu0 0
        %1013 = vmatpush1.bf16.msra.mxu0 %v979
        %1014 = vmatprep.subr.bf16.mxu0 0
        %1015 = vmatpush1.bf16.msra.mxu0 %v980
        %1016 = vmatprep.subr.bf16.mxu0 0
        %1017 = vmatpush1.bf16.msra.mxu0 %v981
        %1018 = vmatprep.subr.bf16.mxu0 0
        %1019 = vmatpush1.bf16.msra.mxu0 %v982
        %1020 = vmatprep.subr.bf16.mxu0 0
        %1021 = vmatpush1.bf16.msra.mxu0 %v983
        %1022 = vmatprep.subr.bf16.mxu0 0
        %1023 = vmatpush1.bf16.msra.mxu0 %v984
        %1024 = vmatprep.subr.bf16.mxu0 0
        %1025 = vmatpush1.bf16.msra.mxu0 %v985
        %1026 = vmatprep.subr.bf16.mxu0 0
        %1027 = vmatpush1.bf16.msra.mxu0 %v986
        %1028 = vmatprep.subr.bf16.mxu0 0
        %1029 = vmatpush1.bf16.msra.mxu0 %v987
        %1030 = vmatprep.subr.bf16.mxu0 0
        %1031 = vmatpush1.bf16.msra.mxu0 %v988
        %1032 = vmatprep.subr.bf16.mxu0 0
        %1033 = vmatpush1.bf16.msra.mxu0 %v989
        %1034 = vmatprep.subr.bf16.mxu0 0
        %1035 = vmatpush1.bf16.msra.mxu0 %v990
        %1036 = vmatprep.subr.bf16.mxu0 0
        %1037 = vmatpush1.bf16.msra.mxu0 %v991
        %1038 = vmatprep.subr.bf16.mxu0 0
        %1039 = vmatpush1.bf16.msra.mxu0 %v992
        %1040 = vmatprep.subr.bf16.mxu0 0
        %1041 = vmatpush1.bf16.msra.mxu0 %v993
        %1042 = vmatprep.mubr.bf16.mxu0 %v874
        %1043 = vmatmul.mubr.bf16.gmra.mrb[0].mxu0 %v873
        %v1044 = vpop.f32.mrb[0].mxu0
        %v1045 = vadd.f32 %v912, %v1044
        %v1046 = vpop.f32.mrb[0].mxu0
        %v1047 = vpop.f32.mrb[0].mxu0
        %v1048 = vadd.f32 %v912, %v1047
        %v1049 = vpop.f32.mrb[0].mxu0
        %1050 = vdwg.mxu0
        %v1051 = vmax.f32 %v1045, 0.0
        %v1052 = vmax.f32 %v1048, 0.0
        %v1053 = vadd.f32 %v1051, %v1052
        %v1054 = vrot.slane %v1053, 4
        %v1055 = vadd.f32 %v1053, %v1054
        %v1056 = vrot.slane %v1055, 2
        %v1057 = vadd.f32 %v1055, %v1056
        %v1058 = vrot.slane %v1057, 1
        %v1059 = vadd.f32 %v1057, %v1058
        %v1060 = vmul.f32 %v1059, %v647
        %v1061 = vpack.c.bf16 %v648, %v648
        %v1062 = vpack.c.bf16 %v854, %v854
        %v1063 = vpack.c.bf16 %v1060, %v1060
        %v1064 = vld [vmem:[#allocation11] sm:$0xf]
        %v1065 = vld [vmem:[#allocation11 + $0x4] sm:$0xf]
        %v1066 = vld [vmem:[#allocation11 + $0x8] sm:$0xf]
        %v1067 = vld [vmem:[#allocation11 + $0xc] sm:$0xf]
        %v1068 = vld [vmem:[#allocation11 + $0x10] sm:$0xf]
        %v1069 = vld [vmem:[#allocation11 + $0x14] sm:$0xf]
        %v1070 = vld [vmem:[#allocation11 + $0x18] sm:$0xf]
        %v1071 = vld [vmem:[#allocation11 + $0x1c] sm:$0xf]
        %v1072 = vld [vmem:[#allocation11 + $0x20] sm:$0xf]
        %v1073 = vld [vmem:[#allocation11 + $0x24] sm:$0xf]
        %v1074 = vld [vmem:[#allocation11 + $0x28] sm:$0xf]
        %v1075 = vld [vmem:[#allocation11 + $0x2c] sm:$0xf]
        %v1076 = vld [vmem:[#allocation11 + $0x30] sm:$0xf]
        %v1077 = vld [vmem:[#allocation11 + $0x34] sm:$0xf]
        %v1078 = vld [vmem:[#allocation11 + $0x38] sm:$0xf]
        %v1079 = vld [vmem:[#allocation11 + $0x3c] sm:$0xf]
        %v1080 = vld [vmem:[#allocation11 + $0x40] sm:$0xf]
        %v1081 = vld [vmem:[#allocation11 + $0x44] sm:$0xf]
        %v1082 = vld [vmem:[#allocation11 + $0x48] sm:$0xf]
        %v1083 = vld [vmem:[#allocation11 + $0x4c] sm:$0xf]
        %v1084 = vld [vmem:[#allocation11 + $0x50] sm:$0xf]
        %v1085 = vld [vmem:[#allocation11 + $0x54] sm:$0xf]
        %v1086 = vld [vmem:[#allocation11 + $0x58] sm:$0xf]
        %v1087 = vld [vmem:[#allocation11 + $0x5c] sm:$0xf]
        %v1088 = vld [vmem:[#allocation11 + $0x60] sm:$0xf]
        %v1089 = vld [vmem:[#allocation11 + $0x64] sm:$0xf]
        %v1090 = vld [vmem:[#allocation11 + $0x68] sm:$0xf]
        %v1091 = vld [vmem:[#allocation11 + $0x6c] sm:$0xf]
        %v1092 = vld [vmem:[#allocation11 + $0x70] sm:$0xf]
        %v1093 = vld [vmem:[#allocation11 + $0x74] sm:$0xf]
        %v1094 = vld [vmem:[#allocation11 + $0x78] sm:$0xf]
        %v1095 = vld [vmem:[#allocation11 + $0x7c] sm:$0xf]
        %v1096 = vld [vmem:[#allocation11 + $0x80] sm:$0xf]
        %v1097 = vld [vmem:[#allocation11 + $0x84] sm:$0xf]
        %v1098 = vld [vmem:[#allocation11 + $0x88] sm:$0xf]
        %v1099 = vld [vmem:[#allocation11 + $0x8c] sm:$0xf]
        %v1100 = vld [vmem:[#allocation11 + $0x90] sm:$0xf]
        %v1101 = vld [vmem:[#allocation11 + $0x94] sm:$0xf]
        %v1102 = vld [vmem:[#allocation11 + $0x98] sm:$0xf]
        %v1103 = vld [vmem:[#allocation11 + $0x9c] sm:$0xf]
        %v1104 = vld [vmem:[#allocation11 + $0xa0] sm:$0xf]
        %v1105 = vld [vmem:[#allocation11 + $0xa4] sm:$0xf]
        %v1106 = vld [vmem:[#allocation11 + $0xa8] sm:$0xf]
        %v1107 = vld [vmem:[#allocation11 + $0xac] sm:$0xf]
        %v1108 = vld [vmem:[#allocation11 + $0xb0] sm:$0xf]
        %v1109 = vld [vmem:[#allocation11 + $0xb4] sm:$0xf]
        %v1110 = vld [vmem:[#allocation11 + $0xb8] sm:$0xf]
        %v1111 = vld [vmem:[#allocation11 + $0xbc] sm:$0xf]
        %v1112 = vld [vmem:[%s8] sm:$0x1]
        %v1161 = vunpack.c.l.b16 %v1064
        %v1162 = vunpack.c.l.b16 %v1065
        %v1163 = vunpack.c.l.b16 %v1066
        %v1164 = vunpack.c.l.b16 %v1067
        %v1165 = vunpack.c.l.b16 %v1068
        %v1166 = vunpack.c.l.b16 %v1069
        %v1167 = vunpack.c.l.b16 %v1070
        %v1168 = vunpack.c.l.b16 %v1071
        %v1169 = vunpack.c.l.b16 %v1072
        %v1170 = vunpack.c.l.b16 %v1073
        %v1171 = vunpack.c.l.b16 %v1074
        %v1172 = vunpack.c.l.b16 %v1075
        %v1173 = vunpack.c.l.b16 %v1076
        %v1174 = vunpack.c.l.b16 %v1077
        %v1175 = vunpack.c.l.b16 %v1078
        %v1176 = vunpack.c.l.b16 %v1079
        %v1177 = vunpack.c.l.b16 %v1080
        %v1178 = vunpack.c.l.b16 %v1081
        %v1179 = vunpack.c.l.b16 %v1082
        %v1180 = vunpack.c.l.b16 %v1083
        %v1181 = vunpack.c.l.b16 %v1084
        %v1182 = vunpack.c.l.b16 %v1085
        %v1183 = vunpack.c.l.b16 %v1086
        %v1184 = vunpack.c.l.b16 %v1087
        %v1185 = vunpack.c.l.b16 %v1088
        %v1186 = vunpack.c.l.b16 %v1089
        %v1187 = vunpack.c.l.b16 %v1090
        %v1188 = vunpack.c.l.b16 %v1091
        %v1189 = vunpack.c.l.b16 %v1092
        %v1190 = vunpack.c.l.b16 %v1093
        %v1191 = vunpack.c.l.b16 %v1094
        %v1192 = vunpack.c.l.b16 %v1095
        %v1193 = vunpack.c.l.b16 %v1096
        %v1194 = vunpack.c.l.b16 %v1097
        %v1195 = vunpack.c.l.b16 %v1098
        %v1196 = vunpack.c.l.b16 %v1099
        %v1197 = vunpack.c.l.b16 %v1100
        %v1198 = vunpack.c.l.b16 %v1101
        %v1199 = vunpack.c.l.b16 %v1102
        %v1200 = vunpack.c.l.b16 %v1103
        %v1201 = vunpack.c.l.b16 %v1104
        %v1202 = vunpack.c.l.b16 %v1105
        %v1203 = vunpack.c.l.b16 %v1106
        %v1204 = vunpack.c.l.b16 %v1107
        %v1205 = vunpack.c.l.b16 %v1108
        %v1206 = vunpack.c.l.b16 %v1109
        %v1207 = vunpack.c.l.b16 %v1110
        %v1208 = vunpack.c.l.b16 %v1111
        %v1209 = vpack.c.b16 %v1162, %v1161
        %v1210 = vpack.c.b16 %v1164, %v1163
        %v1211 = vpack.c.b16 %v1166, %v1165
        %v1212 = vpack.c.b16 %v1168, %v1167
        %v1213 = vpack.c.b16 %v1170, %v1169
        %v1214 = vpack.c.b16 %v1172, %v1171
        %v1215 = vpack.c.b16 %v1174, %v1173
        %v1216 = vpack.c.b16 %v1176, %v1175
        %v1217 = vpack.c.b16 %v1178, %v1177
        %v1218 = vpack.c.b16 %v1180, %v1179
        %v1219 = vpack.c.b16 %v1182, %v1181
        %v1220 = vpack.c.b16 %v1184, %v1183
        %v1221 = vpack.c.b16 %v1186, %v1185
        %v1222 = vpack.c.b16 %v1188, %v1187
        %v1223 = vpack.c.b16 %v1190, %v1189
        %v1224 = vpack.c.b16 %v1192, %v1191
        %v1225 = vpack.c.b16 %v1194, %v1193
        %v1226 = vpack.c.b16 %v1196, %v1195
        %v1227 = vpack.c.b16 %v1198, %v1197
        %v1228 = vpack.c.b16 %v1200, %v1199
        %v1229 = vpack.c.b16 %v1202, %v1201
        %v1230 = vpack.c.b16 %v1204, %v1203
        %v1231 = vpack.c.b16 %v1206, %v1205
        %v1232 = vpack.c.b16 %v1208, %v1207
        %1257 = vmatprep.subr.bf16.mxu0 0
        %1258 = vmatpush1.bf16.msra.mxu0 %v1209
        %1259 = vmatprep.subr.bf16.mxu0 0
        %1260 = vmatpush1.bf16.msra.mxu0 %v1210
        %1261 = vmatprep.subr.bf16.mxu0 0
        %1262 = vmatpush1.bf16.msra.mxu0 %v1211
        %1263 = vmatprep.subr.bf16.mxu0 0
        %1264 = vmatpush1.bf16.msra.mxu0 %v1212
        %1265 = vmatprep.subr.bf16.mxu0 0
        %1266 = vmatpush1.bf16.msra.mxu0 %v1213
        %1267 = vmatprep.subr.bf16.mxu0 0
        %1268 = vmatpush1.bf16.msra.mxu0 %v1214
        %1269 = vmatprep.subr.bf16.mxu0 0
        %1270 = vmatpush1.bf16.msra.mxu0 %v1215
        %1271 = vmatprep.subr.bf16.mxu0 0
        %1272 = vmatpush1.bf16.msra.mxu0 %v1216
        %1273 = vmatprep.subr.bf16.mxu0 0
        %1274 = vmatpush1.bf16.msra.mxu0 %v1217
        %1275 = vmatprep.subr.bf16.mxu0 0
        %1276 = vmatpush1.bf16.msra.mxu0 %v1218
        %1277 = vmatprep.subr.bf16.mxu0 0
        %1278 = vmatpush1.bf16.msra.mxu0 %v1219
        %1279 = vmatprep.subr.bf16.mxu0 0
        %1280 = vmatpush1.bf16.msra.mxu0 %v1220
        %1281 = vmatprep.subr.bf16.mxu0 0
        %1282 = vmatpush1.bf16.msra.mxu0 %v1221
        %1283 = vmatprep.subr.bf16.mxu0 0
        %1284 = vmatpush1.bf16.msra.mxu0 %v1222
        %1285 = vmatprep.subr.bf16.mxu0 0
        %1286 = vmatpush1.bf16.msra.mxu0 %v1223
        %1287 = vmatprep.subr.bf16.mxu0 0
        %1288 = vmatpush1.bf16.msra.mxu0 %v1224
        %1289 = vmatprep.mubr.bf16.mxu0 %v1062
        %1290 = vmatmul.mubr.bf16.gmra.mrb[0].mxu0 %v1061
        %v1291 = vpop.f32.mrb[0].mxu0
        %v1292 = vadd.f32 %v1112, %v1291
        %v1293 = vpop.f32.mrb[0].mxu0
        %v1294 = vpop.f32.mrb[0].mxu0
        %v1295 = vpop.f32.mrb[0].mxu0
        %1296 = vdwg.mxu0
        %1297 = vmatprep.subr.bf16.mxu0 0
        %1298 = vmatpush1.bf16.msra.mxu0 %v1225
        %1299 = vmatprep.subr.bf16.mxu0 0
        %1300 = vmatpush1.bf16.msra.mxu0 %v1226
        %1301 = vmatprep.subr.bf16.mxu0 0
        %1302 = vmatpush1.bf16.msra.mxu0 %v1227
        %1303 = vmatprep.subr.bf16.mxu0 0
        %1304 = vmatpush1.bf16.msra.mxu0 %v1228
        %1305 = vmatprep.subr.bf16.mxu0 0
        %1306 = vmatpush1.bf16.msra.mxu0 %v1229
        %1307 = vmatprep.subr.bf16.mxu0 0
        %1308 = vmatpush1.bf16.msra.mxu0 %v1230
        %1309 = vmatprep.subr.bf16.mxu0 0
        %1310 = vmatpush1.bf16.msra.mxu0 %v1231
        %1311 = vmatprep.subr.bf16.mxu0 0
        %1312 = vmatpush1.bf16.msra.mxu0 %v1232
        %1313 = vmatprep.subr.bf16.mxu0 0
        %1314 = vmatpush1.bf16.msra.mxu0 0
        %1315 = vmatprep.subr.bf16.mxu0 0
        %1316 = vmatpush1.bf16.msra.mxu0 0
        %1317 = vmatprep.subr.bf16.mxu0 0
        %1318 = vmatpush1.bf16.msra.mxu0 0
        %1319 = vmatprep.subr.bf16.mxu0 0
        %1320 = vmatpush1.bf16.msra.mxu0 0
        %1321 = vmatprep.subr.bf16.mxu0 0
        %1322 = vmatpush1.bf16.msra.mxu0 0
        %1323 = vmatprep.subr.bf16.mxu0 0
        %1324 = vmatpush1.bf16.msra.mxu0 0
        %1325 = vmatprep.subr.bf16.mxu0 0
        %1326 = vmatpush1.bf16.msra.mxu0 0
        %1327 = vmatprep.subr.bf16.mxu0 0
        %1328 = vmatpush1.bf16.msra.mxu0 0
        %1329 = vmatprep.mubr.bf16.mxu0 0
        %1330 = vmatmul.mubr.bf16.gmra.mrb[0].mxu0 %v1063
        %v1331 = vpop.f32.mrb[0].mxu0
        %v1332 = vadd.f32 %v1292, %v1331
        %v1333 = vpop.f32.mrb[0].mxu0
        %v1334 = vpop.f32.mrb[0].mxu0
        %v1335 = vpop.f32.mrb[0].mxu0
        %1336 = vdwg.mxu0
        %1337 = vst [vmem:[%s407] sm:$0x1] %v1332
        %s1338 = sand.u32 %s230, 1
        %s1339 = scalar_lea.sflag [#allocation5], %s1338
        %s1340 = sand.u32 %s230, 1
        %s1341 = scalar_lea.vmem [#allocation12], %s1340
        // Predicated region
        $region77: #{tpu_custom_call.1} parent=55 // pred_check
          %p1342 = pneg %p240
        $region78: #{tpu_custom_call.1} parent=55 // pred_check_branch
          %1344 = sbr.rel (%p1342) target = $region80
        $region79: #{tpu_custom_call.1} parent=55 // pred_region
          %s1346 = ssub.s32 16, 16
          %1347 = vsyncadd %s1339, %s1346
          %s1348 = smul.addr %s28, 16
          %s1349 = scalar_lea.hbm %s9, %s1348
          %s1351 = sshll.u32 %s1341, 4
          %s1352 = int_to_ptr.vmem [resolvable:$true] %s1351
          %1354 = dma.vmem_to_hbm [thread:$0]  %s1352, 16, %s1349, %s1339
        $region80: #{tpu_custom_call.1} parent=55 // pred_fallthru
          _
      $region56: #{tpu_custom_call.1} parent=5 // pred_fallthru
        _
      %p1355 = scmp.le.s32.totalorder 2, %s23
      // Predicated region
      $region81: #{tpu_custom_call.1} parent=5 // pred_check
        %p1356 = pneg %p1355
      $region82: #{tpu_custom_call.1} parent=5 // pred_check_branch
        %1358 = sbr.rel (%p1356) target = $region84
      $region83: #{tpu_custom_call.1} parent=5 // pred_region
        %s1359 = ssub.s32 %s23, 2
        // Predicated region
        $region85: #{tpu_custom_call.1} parent=83 // pred_check
          %p1360 = pneg %p246
        $region86: #{tpu_custom_call.1} parent=83 // pred_check_branch
          %1362 = sbr.rel (%p1360) target = $region88
        $region87: #{tpu_custom_call.1} parent=83 // pred_region
          %s1363 = sand.u32 %s231, 1
          %s1364 = scalar_lea.sflag [#allocation5], %s1363
          %s1365 = sand.u32 %s231, 1
          %s1366 = scalar_lea.vmem [#allocation12], %s1365
          %1367 = dma.done %s1364, 16
        $region88: #{tpu_custom_call.1} parent=83 // pred_fallthru
          _
      $region84: #{tpu_custom_call.1} parent=5 // pred_fallthru
        _
    $region6: #{tpu_custom_call.1} parent=1 // loop_footer
      %s27 = sadd.s32 1, %s23
    $region7: #{tpu_custom_call.1} parent=1 // loop_footer_branch
      %22 = sbr.rel target = $region3
    $region8: #{tpu_custom_call.1} parent=1 // loop_exit
      _
    %1368 = vsyncpa [#allocation4], 1
    %s1369 = scalar_lea.sflag [#allocation4], 1
    %1370 = vsyncpa %s1369, 1
    %1371 = vsyncpa [#allocation7], 1
    %1372 = vsyncpa [#allocation10], 1
    %1373 = vsyncpa [#allocation5], 1
    %s1374 = scalar_lea.sflag [#allocation5], 1
    %1375 = vsyncpa %s1374, 1

</llo_original>
